<compile_context>
chip_gen: v5e
topology: v5e:2x2
jax: 0.10.0
libtpu: 0.0.40
codegen_flags: <defaults>
</compile_context>

<pallas_src>
import jax
import jax.numpy as jnp
from jax.experimental import pallas as pl
from jax.experimental.pallas import tpu as pltpu


def rgcn_kernel(a_ref, xw_ref, root_ref, o_ref, acc_ref):
    r = pl.program_id(1)
    k = pl.program_id(2)

    # Initialize the accumulator with the precomputed root transform + bias
    # exactly once per dst-row tile.
    @pl.when(jnp.logical_and(r == 0, k == 0))
    def _():
        acc_ref[...] = root_ref[...]

    # Dominant matmul: bf16 x bf16 on the MXU, fp32 accumulation.
    acc_ref[...] += jnp.dot(a_ref[...], xw_ref[...],
                            preferred_element_type=jnp.float32)

    # Store once, after the last (relation, src-tile) step for this dst tile.
    @pl.when(jnp.logical_and(r == pl.num_programs(1) - 1,
                             k == pl.num_programs(2) - 1))
    def _():
        o_ref[...] = acc_ref[...].astype(o_ref.dtype)


def build_norm_adjacency(edge_index, edge_type, num_nodes, num_relations,
                         dtype=jnp.float32):
    """Dense per-relation, row-normalized (mean-aggregation) adjacency.

    A[r, i, j] = (#edges j->i of type r) / (#incoming edges of type r at i)

    Degrees come from the edge list (O(E)); the dense array is touched by a
    single fp32 scatter of per-edge 1/deg weights, then cast to `dtype`.
    """
    src = edge_index[0]
    dst = edge_index[1]
    deg = jnp.zeros((num_relations, num_nodes), jnp.float32)
    deg = deg.at[edge_type, dst].add(1.0)
    inv_deg = 1.0 / jnp.maximum(deg, 1.0)
    w_e = inv_deg[edge_type, dst]                         # per-edge 1/deg weight
    a = jnp.zeros((num_relations, num_nodes, num_nodes), jnp.float32)
    a = a.at[edge_type, dst, src].add(w_e)
    return a.astype(dtype)


def _round_up(v, m):
    return ((v + m - 1) // m) * m


def _choose_tiles(n, preferred=512):
    """Return (tm, tk, n_pad).

    tk: src/lane tile of A, multiple of 128, <= preferred.
    tm: dst/sublane tile, halved until there are >= 2 dst tiles so v7x's two
        TensorCores both get work on the "parallel" axis.
    n_pad: node count padded to a multiple of tk (no full-extent fallback).
    """
    n128 = _round_up(max(n, 1), 128)
    tk = min(preferred, n128)
    n_pad = _round_up(n128, tk)
    tm = tk
    while tm > 8 and n_pad // tm < 2:
        tm //= 2
    return tm, tk, n_pad


def rgcn_forward(x, edge_index, edge_type, edge_attr, weight, root, bias,
                 num_relations, *, a_dtype=jnp.bfloat16, tile=512):
    """Pallas TPU forward for CustomGraphConvolutionLayer__ (RGCNConv)."""
    del edge_attr  # unused by this module (signature parity only)
    n, f_in = x.shape
    f_out = weight.shape[-1]
    f_out_p = _round_up(f_out, 128)

    tm, tk, n_pad = _choose_tiles(n, tile)

    # Zero-pad nodes so the grid divides evenly; padded rows/cols of A and XW
    # are zero, contribute nothing, and are sliced off at the end.
    x_p = jnp.pad(x, ((0, n_pad - n), (0, 0)))

    # Dense normalized adjacency, streamed in bf16 (dominant HBM stream).
    a = build_norm_adjacency(edge_index, edge_type, n_pad, num_relations,
                             dtype=a_dtype)

    # Hoist both small matmuls out of the hot loop:
    #   XW[r] = X @ W[r]           (else recomputed per dst tile, K=32 shaped)
    #   root_out = X @ W_root + b  (fp32, accumulator initializer)
    hp = jax.lax.Precision.HIGHEST
    w_p = jnp.pad(weight, ((0, 0), (0, 0), (0, f_out_p - f_out)))
    root_p = jnp.pad(root, ((0, 0), (0, f_out_p - f_out)))
    bias_p = jnp.pad(bias, (0, f_out_p - f_out))
    xw = jnp.einsum('nf,rfo->rno', x_p, w_p, precision=hp).astype(a_dtype)
    root_out = (jnp.dot(x_p, root_p, precision=hp) + bias_p).astype(jnp.float32)

    grid = (n_pad // tm, num_relations, n_pad // tk)

    grid_spec = pltpu.PrefetchScalarGridSpec(
        num_scalar_prefetch=0,
        grid=grid,
        in_specs=[
            # A[r] tile (dst rows i, src cols k); relation dim squeezed away.
            pl.BlockSpec((pl.Squeezed(), tm, tk), lambda i, r, k: (r, i, k)),
            # XW[r] tile (src rows k, padded out features).
            pl.BlockSpec((pl.Squeezed(), tk, f_out_p), lambda i, r, k: (r, k, 0)),
            # Precomputed root transform + bias for dst rows i (fp32).
            pl.BlockSpec((tm, f_out_p), lambda i, r, k: (i, 0)),
        ],
        out_specs=pl.BlockSpec((tm, f_out_p), lambda i, r, k: (i, 0)),
        scratch_shapes=[pltpu.VMEM((tm, f_out_p), jnp.float32)],
    )

    out_p = pl.pallas_call(
        rgcn_kernel,
        out_shape=jax.ShapeDtypeStruct((n_pad, f_out_p), x.dtype),
        grid_spec=grid_spec,
        compiler_params=pltpu.CompilerParams(
            dimension_semantics=("parallel", "arbitrary", "arbitrary")),
    )(a, xw, root_out)

    return out_p[:n, :f_out]


def rgcn_reference_fp32(x, edge_index, edge_type, weight, root, bias,
                        num_relations):
    """Exact fp32 PyG-RGCNConv (mean aggregation) semantics."""
    hp = jax.lax.Precision.HIGHEST
    a = build_norm_adjacency(edge_index, edge_type, x.shape[0], num_relations,
                             jnp.float32)
    out = jnp.dot(x, root, precision=hp) + bias
    for r in range(num_relations):
        out = out + jnp.dot(jnp.dot(a[r], x, precision=hp), weight[r],
                            precision=hp)
    return out


def rgcn_reference_matched(x, edge_index, edge_type, weight, root, bias,
                           num_relations, a_dtype=jnp.bfloat16):
    """Reference mirroring the kernel's bf16 A and bf16 XW streams."""
    hp = jax.lax.Precision.HIGHEST
    a = build_norm_adjacency(edge_index, edge_type, x.shape[0], num_relations,
                             jnp.float32)
    a = a.astype(a_dtype).astype(jnp.float32)
    out = jnp.dot(x, root, precision=hp) + bias
    for r in range(num_relations):
        xw = jnp.dot(x, weight[r], precision=hp).astype(a_dtype)
        out = out + jnp.dot(a[r], xw.astype(jnp.float32), precision=hp)
    return out


if __name__ == "__main__":
    # small synthetic graph (big enough to exercise the tiled (2, R, 1) grid)
    num_nodes = 512
    in_features = 32
    out_features = 32
    num_relations = 4
    num_edges = 2048

    key = jax.random.PRNGKey(0)
    (k_x, k_src, k_dst, k_type, k_attr,
     k_w, k_root, k_bias) = jax.random.split(key, 8)

    x = jax.random.normal(k_x, (num_nodes, in_features), jnp.float32)
    src = jax.random.randint(k_src, (num_edges,), 0, num_nodes, jnp.int32)
    dst = jax.random.randint(k_dst, (num_edges,), 0, num_nodes, jnp.int32)
    edge_index = jnp.stack([src, dst], axis=0)             # [2, E]
    edge_type = jax.random.randint(k_type, (num_edges,), 0, num_relations,
                                   jnp.int32)
    edge_attr = jax.random.normal(k_attr, (num_edges, 8), jnp.float32)  # unused

    # deterministic parameter init (glorot-like scaled normals)
    w_scale = (2.0 / (in_features + out_features)) ** 0.5
    weight = w_scale * jax.random.normal(
        k_w, (num_relations, in_features, out_features), jnp.float32)
    root = w_scale * jax.random.normal(
        k_root, (in_features, out_features), jnp.float32)
    bias = 0.01 * jax.random.normal(k_bias, (out_features,), jnp.float32)

    out = rgcn_forward(x, edge_index, edge_type, edge_attr,
                       weight, root, bias, num_relations)
    out = jax.block_until_ready(out)
    assert out.shape == (num_nodes, out_features)

    # tight check vs a reference using the same bf16 A / bf16 XW streams
    ref_matched = rgcn_reference_matched(x, edge_index, edge_type, weight,
                                         root, bias, num_relations)
    err_m = float(jnp.max(jnp.abs(out - ref_matched)))
    assert jnp.allclose(out, ref_matched, atol=3e-3, rtol=3e-3), err_m

    # looser check vs exact fp32 RGCNConv semantics (bf16 quantization of A/XW)
    ref_fp32 = rgcn_reference_fp32(x, edge_index, edge_type, weight, root,
                                   bias, num_relations)
    err_f = float(jnp.max(jnp.abs(out - ref_fp32)))
    assert jnp.allclose(out, ref_fp32, atol=5e-2, rtol=5e-2), err_f

    print("KERNEL_OK")
</pallas_src>

<mosaic_0001>
module attributes {stable_mosaic.version = 11 : i64} {
  func.func @rgcn_kernel(%arg0: i32, %arg1: i32, %arg2: i32, %arg3: memref<1x256x512xbf16, #tpu.memory_space<vmem>>, %arg4: memref<1x512x128xbf16, #tpu.memory_space<vmem>>, %arg5: memref<256x128xf32, #tpu.memory_space<vmem>>, %arg6: memref<256x128xf32, #tpu.memory_space<vmem>>, %arg7: memref<256x128xf32, #tpu.memory_space<vmem>>) attributes {dimension_semantics = [#tpu.dimension_semantics<parallel>, #tpu.dimension_semantics<arbitrary>, #tpu.dimension_semantics<arbitrary>], iteration_bounds = array<i64: 2, 4, 1>, scalar_prefetch = 0 : i64, scratch_operands = 1 : i64, tpu.core_type = #tpu.core_type<tc>, window_params = [{transform_indices = @transform_0, window_bounds = array<i64: 1, 256, 512>}, {transform_indices = @transform_1, window_bounds = array<i64: 1, 512, 128>}, {transform_indices = @transform_2, window_bounds = array<i64: 256, 128>}, {transform_indices = @transform_3, window_bounds = array<i64: 256, 128>}]} {
    %c0_i32 = arith.constant 0 : i32
    %0 = arith.cmpi eq, %arg1, %c0_i32 : i32
    %c0_i32_0 = arith.constant 0 : i32
    %1 = arith.cmpi eq, %arg2, %c0_i32_0 : i32
    %2 = arith.andi %0, %1 : i1
    %3 = arith.extui %2 : i1 to i32
    %c0_i32_1 = arith.constant 0 : i32
    %4 = arith.cmpi ne, %3, %c0_i32_1 : i32
    scf.if %4 {
      %c0_13 = arith.constant 0 : index
      %c0_14 = arith.constant 0 : index
      %18 = vector.load %arg5[%c0_13, %c0_14] : memref<256x128xf32, #tpu.memory_space<vmem>>, vector<256x128xf32>
      %c0_15 = arith.constant 0 : index
      %c0_16 = arith.constant 0 : index
      %19 = vector.load %arg7[%c0_15, %c0_16] : memref<256x128xf32, #tpu.memory_space<vmem>>, vector<256x128xf32>
      tpu.vector_store %arg7[%c0_15, %c0_16], %18 {strides = array<i32>} : memref<256x128xf32, #tpu.memory_space<vmem>>, vector<256x128xf32>,
    } else {
    }
    %c0 = arith.constant 0 : index
    %c0_2 = arith.constant 0 : index
    %5 = vector.load %arg7[%c0, %c0_2] : memref<256x128xf32, #tpu.memory_space<vmem>>, vector<256x128xf32>
    %c0_3 = arith.constant 0 : index
    %c0_4 = arith.constant 0 : index
    %c0_5 = arith.constant 0 : index
    %6 = vector.load %arg3[%c0_3, %c0_4, %c0_5] : memref<1x256x512xbf16, #tpu.memory_space<vmem>>, vector<1x256x512xbf16>
    %7 = vector.shape_cast %6 : vector<1x256x512xbf16> to vector<256x512xbf16>
    %c0_6 = arith.constant 0 : index
    %c0_7 = arith.constant 0 : index
    %c0_8 = arith.constant 0 : index
    %8 = vector.load %arg4[%c0_6, %c0_7, %c0_8] : memref<1x512x128xbf16, #tpu.memory_space<vmem>>, vector<1x512x128xbf16>
    %9 = vector.shape_cast %8 : vector<1x512x128xbf16> to vector<512x128xbf16>
    %cst = arith.constant dense<0.000000e+00> : vector<256x128xf32>
    %10 = tpu.matmul %7, %9, %cst {dimension_numbers = #tpu.dot_dimension_numbers<[1], [0], [0], [1], [0, 0, 1, 1], [], []>} : vector<256x512xbf16>, vector<512x128xbf16>, vector<256x128xf32> -> vector<256x128xf32>
    %11 = arith.addf %5, %10 : vector<256x128xf32>
    %c0_9 = arith.constant 0 : index
    %c0_10 = arith.constant 0 : index
    %12 = vector.load %arg7[%c0_9, %c0_10] : memref<256x128xf32, #tpu.memory_space<vmem>>, vector<256x128xf32>
    tpu.vector_store %arg7[%c0_9, %c0_10], %11 {strides = array<i32>} : memref<256x128xf32, #tpu.memory_space<vmem>>, vector<256x128xf32>,
    %c3_i32 = arith.constant 3 : i32
    %13 = arith.cmpi eq, %arg1, %c3_i32 : i32
    %c0_i32_11 = arith.constant 0 : i32
    %14 = arith.cmpi eq, %arg2, %c0_i32_11 : i32
    %15 = arith.andi %13, %14 : i1
    %16 = arith.extui %15 : i1 to i32
    %c0_i32_12 = arith.constant 0 : i32
    %17 = arith.cmpi ne, %16, %c0_i32_12 : i32
    scf.if %17 {
      %c0_13 = arith.constant 0 : index
      %c0_14 = arith.constant 0 : index
      %18 = vector.load %arg7[%c0_13, %c0_14] : memref<256x128xf32, #tpu.memory_space<vmem>>, vector<256x128xf32>
      %c0_15 = arith.constant 0 : index
      %c0_16 = arith.constant 0 : index
      %19 = vector.load %arg6[%c0_15, %c0_16] : memref<256x128xf32, #tpu.memory_space<vmem>>, vector<256x128xf32>
      tpu.vector_store %arg6[%c0_15, %c0_16], %18 {strides = array<i32>} : memref<256x128xf32, #tpu.memory_space<vmem>>, vector<256x128xf32>,
    } else {
    }
    return
  }
  func.func @transform_0(%arg0: i32, %arg1: i32, %arg2: i32) -> (i32, i32, i32) {
    %c0_i32 = arith.constant 0 : i32
    return %arg1, %arg0, %arg2 : i32, i32, i32
  }
  func.func @transform_1(%arg0: i32, %arg1: i32, %arg2: i32) -> (i32, i32, i32) {
    %c0_i32 = arith.constant 0 : i32
    %c0_i32_0 = arith.constant 0 : i32
    return %arg1, %arg2, %c0_i32 : i32, i32, i32
  }
  func.func @transform_2(%arg0: i32, %arg1: i32, %arg2: i32) -> (i32, i32) {
    %c0_i32 = arith.constant 0 : i32
    %c0_i32_0 = arith.constant 0 : i32
    return %arg0, %c0_i32 : i32, i32
  }
  func.func @transform_3(%arg0: i32, %arg1: i32, %arg2: i32) -> (i32, i32) {
    %c0_i32 = arith.constant 0 : i32
    %c0_i32_0 = arith.constant 0 : i32
    return %arg0, %c0_i32 : i32, i32
  }
}

</mosaic_0001>

<llo_original>
// kernel: tpu_custom_call.1
$region0: #{tpu_custom_call.1}
  #allocation0 [shape = 'u32[]', space=smem, size = 0x4, offset = 0x4, fixed_abs, tag = 'smem constant byte address 0x4 - core index']
  #allocation1 [shape = 'u32[72,128]{1,0:T(1,128)}', space=vmem, size = 0x9000, scoped, tag = 'internal scratch']
  #allocation2 [shape = 'f32[256,128]{1,0:T(8,128)}', space=vmem, size = 0x20000, scoped, tag = 'scratch operand']
  %s0 = inlined_call_operand.hbm [shape: bf16[4,512,512], index: 0, kind: input, shape index: {}]
  %s1 = inlined_call_operand.hbm [shape: bf16[4,512,128], index: 1, kind: input, shape index: {}]
  %s2 = inlined_call_operand.hbm [shape: f32[512,128], index: 2, kind: input, shape index: {}]
  %s3 = inlined_call_operand.hbm [shape: f32[512,128], index: 3, kind: output, shape index: {}]
  %s4 = sld [smem:[#allocation0]]
  $region65: #{tpu_custom_call.1} parent=0
    _
  %s6 = ssub.s32 1, %s4
  %s7 = scalar_select 0, %s6, %s4
  $region1: #{tpu_custom_call.1} parent=0
    #allocation3 [shape = 'u8[524288]{0}', space=vmem, size = 0x80000, scoped, tag = 'input window, operand 0']
    #allocation4 [shape = 's32[2]{0}', space=sflag, size = 0x8, scoped, tag = 'scoped memory for tpu_custom_call.1']
    #allocation5 [shape = 's32[2]{0}', space=sflag, size = 0x8, scoped, tag = 'scoped memory for tpu_custom_call.1']
    #allocation6 [shape = 'u8[262144]{0}', space=vmem, size = 0x40000, scoped, tag = 'input window, operand 1']
    #allocation7 [shape = 's32[2]{0}', space=sflag, size = 0x8, scoped, tag = 'scoped memory for tpu_custom_call.1']
    #allocation8 [shape = 'u8[262144]{0}', space=vmem, size = 0x40000, scoped, tag = 'input window, operand 2']
    #allocation9 [shape = 'u8[262144]{0}', space=vmem, size = 0x40000, scoped, tag = 'output window, operand 0']
    %8 = vsyncpa [#allocation4], 0
    %s9 = scalar_lea.sflag [#allocation4], 1
    %10 = vsyncpa %s9, 0
    %11 = vsyncpa [#allocation7], 0
    %s12 = scalar_lea.sflag [#allocation7], 1
    %13 = vsyncpa %s12, 0
    %14 = vsyncpa [#allocation5], 0
    %s15 = scalar_lea.sflag [#allocation5], 1
    %16 = vsyncpa %s15, 0
    loop: start=0, step=1, limit=10
    $region2: #{tpu_custom_call.1} parent=1 // loop_pre_header
      _
    $region3: #{tpu_custom_call.1} parent=1 // loop_header
      %s18 = sphi 0, %s22
      %p19 = scmp.ge.s32.totalorder %s18, 10
      %s25 = sphi 0, %s44
      %s26 = sphi 0, %s40
      %s27 = sphi 0, %s36
      %s28 = sphi 0, %s25
      %s29 = sphi 0, %s26
      %s30 = sphi 0, %s27
      %s31 = sphi 0, %s28
      %s32 = sphi 0, %s29
      %s33 = sphi 0, %s30
      %s51 = sphi 0, %s53
      %s54 = sphi 0, %s51
      %s55 = sphi 0, %s54
      %s71 = sphi 0, %s55
      %s79 = sphi 0, %s81
      %s82 = sphi 0, %s79
      %s83 = sphi 0, %s82
      %s99 = sphi 0, %s83
      %s105 = sphi 0, %s107
      %s108 = sphi 0, %s105
      %s109 = sphi 0, %s108
      %s125 = sphi 0, %s109
      %s131 = sphi 0, %s133
      %s134 = sphi 0, %s131
      %s135 = sphi 0, %s134
      %s151 = sphi 0, %s135
    $region4: #{tpu_custom_call.1} parent=1 // loop_header_branch
      %21 = sbr.rel (%p19) target = $region8
    $region5: #{tpu_custom_call.1} parent=1 // loop_body
      %s23 = ssub.s32 %s18, 1
      %s24 = ssub.s32 %s18, 2
      %s34 = sadd.s32 1, %s27
      %p35 = scmp.ge.s32.totalorder %s34, 1
      %s36 = scalar_select %p35, 0, %s34
      %s37 = sadd.s32 1, %s26
      %s38 = scalar_select %p35, %s37, %s26
      %p39 = scmp.ge.s32.totalorder %s38, 4
      %s40 = scalar_select %p39, 0, %s38
      %s41 = sadd.s32 1, %s25
      %s42 = scalar_select %p39, %s41, %s25
      %p43 = scmp.ge.s32.totalorder %s42, 2
      %s44 = scalar_select %p43, 0, %s42
      %s45 = ssub.s32 %s26, %s40
      %s46 = ssub.s32 %s25, %s44
      %s47 = sor.u32 %s45, %s46
      %s48 = ssub.s32 %s27, %s36
      %s49 = sor.u32 %s47, %s48
      %p50 = scmp.eq.s32.totalorder %s49, 0
      %s52 = sadd.s32 %s51, 1
      %s53 = scalar_select %p50, %s51, %s52
      %p56 = pneg %p50
      %p57 = scmp.eq.s32.totalorder %s18, 7
      %p58 = por %p56, %p57
      %p59 = scmp.ne.s32.totalorder %s51, %s54
      %p60 = scmp.eq.s32.totalorder %s18, 0
      %p61 = por %p59, %p60
      %p62 = scmp.ne.s32.totalorder %s51, %s54
      %p63 = scmp.eq.s32.totalorder %s23, 7
      %p64 = por %p62, %p63
      %p65 = scmp.ne.s32.totalorder %s54, %s55
      %p66 = scmp.eq.s32.totalorder %s23, 0
      %p67 = por %p65, %p66
      %p68 = scmp.ne.s32.totalorder %s54, %s55
      %p69 = scmp.eq.s32.totalorder %s24, 7
      %p70 = por %p68, %p69
      %p72 = scmp.ne.s32.totalorder %s55, %s71
      %p73 = scmp.eq.s32.totalorder %s24, 0
      %p74 = por %p72, %p73
      %s75 = ssub.s32 %s26, %s40
      %s76 = ssub.s32 %s27, %s36
      %s77 = sor.u32 %s75, %s76
      %p78 = scmp.eq.s32.totalorder %s77, 0
      %s80 = sadd.s32 %s79, 1
      %s81 = scalar_select %p78, %s79, %s80
      %p84 = pneg %p78
      %p85 = scmp.eq.s32.totalorder %s18, 7
      %p86 = por %p84, %p85
      %p87 = scmp.ne.s32.totalorder %s79, %s82
      %p88 = scmp.eq.s32.totalorder %s18, 0
      %p89 = por %p87, %p88
      %p90 = scmp.ne.s32.totalorder %s79, %s82
      %p91 = scmp.eq.s32.totalorder %s23, 7
      %p92 = por %p90, %p91
      %p93 = scmp.ne.s32.totalorder %s82, %s83
      %p94 = scmp.eq.s32.totalorder %s23, 0
      %p95 = por %p93, %p94
      %p96 = scmp.ne.s32.totalorder %s82, %s83
      %p97 = scmp.eq.s32.totalorder %s24, 7
      %p98 = por %p96, %p97
      %p100 = scmp.ne.s32.totalorder %s83, %s99
      %p101 = scmp.eq.s32.totalorder %s24, 0
      %p102 = por %p100, %p101
      %s103 = ssub.s32 %s25, %s44
      %p104 = scmp.eq.s32.totalorder %s103, 0
      %s106 = sadd.s32 %s105, 1
      %s107 = scalar_select %p104, %s105, %s106
      %p110 = pneg %p104
      %p111 = scmp.eq.s32.totalorder %s18, 7
      %p112 = por %p110, %p111
      %p113 = scmp.ne.s32.totalorder %s105, %s108
      %p114 = scmp.eq.s32.totalorder %s18, 0
      %p115 = por %p113, %p114
      %p116 = scmp.ne.s32.totalorder %s105, %s108
      %p117 = scmp.eq.s32.totalorder %s23, 7
      %p118 = por %p116, %p117
      %p119 = scmp.ne.s32.totalorder %s108, %s109
      %p120 = scmp.eq.s32.totalorder %s23, 0
      %p121 = por %p119, %p120
      %p122 = scmp.ne.s32.totalorder %s108, %s109
      %p123 = scmp.eq.s32.totalorder %s24, 7
      %p124 = por %p122, %p123
      %p126 = scmp.ne.s32.totalorder %s109, %s125
      %p127 = scmp.eq.s32.totalorder %s24, 0
      %p128 = por %p126, %p127
      %s129 = ssub.s32 %s25, %s44
      %p130 = scmp.eq.s32.totalorder %s129, 0
      %s132 = sadd.s32 %s131, 1
      %s133 = scalar_select %p130, %s131, %s132
      %p136 = pneg %p130
      %p137 = scmp.eq.s32.totalorder %s18, 7
      %p138 = por %p136, %p137
      %p139 = scmp.ne.s32.totalorder %s131, %s134
      %p140 = scmp.eq.s32.totalorder %s18, 0
      %p141 = por %p139, %p140
      %p142 = scmp.ne.s32.totalorder %s131, %s134
      %p143 = scmp.eq.s32.totalorder %s23, 7
      %p144 = por %p142, %p143
      %p145 = scmp.ne.s32.totalorder %s134, %s135
      %p146 = scmp.eq.s32.totalorder %s23, 0
      %p147 = por %p145, %p146
      %p148 = scmp.ne.s32.totalorder %s134, %s135
      %p149 = scmp.eq.s32.totalorder %s24, 7
      %p150 = por %p148, %p149
      %p152 = scmp.ne.s32.totalorder %s135, %s151
      %p153 = scmp.eq.s32.totalorder %s24, 0
      %p154 = por %p152, %p153
      %p155 = scmp.le.s32.totalorder 1, %s18
      %p156 = scmp.lt.s32.totalorder %s18, 9
      %p157 = pnand %p155, %p156
      %p158 = pneg %p157
      // Predicated region
      $region9: #{tpu_custom_call.1} parent=5 // pred_check
        _
      $region10: #{tpu_custom_call.1} parent=5 // pred_check_branch
        %160 = sbr.rel (%p157) target = $region12
      $region11: #{tpu_custom_call.1} parent=5 // pred_region
        %s161 = ssub.s32 %s18, 1
      $region12: #{tpu_custom_call.1} parent=5 // pred_fallthru
        _
      %p162 = scmp.lt.s32.totalorder %s18, 8
      // Predicated region
      $region13: #{tpu_custom_call.1} parent=5 // pred_check
        %p163 = pneg %p162
      $region14: #{tpu_custom_call.1} parent=5 // pred_check_branch
        %165 = sbr.rel (%p163) target = $region16
      $region15: #{tpu_custom_call.1} parent=5 // pred_region
        // Predicated region
        $region17: #{tpu_custom_call.1} parent=15 // pred_check
          %p166 = pneg %p61
        $region18: #{tpu_custom_call.1} parent=15 // pred_check_branch
          %168 = sbr.rel (%p166) target = $region20
        $region19: #{tpu_custom_call.1} parent=15 // pred_region
          %s169 = sand.u32 %s51, 1
          %s170 = scalar_lea.sflag [#allocation4], %s169
          %s171 = sand.u32 %s51, 1
          %s172 = smul.addr %s171, 512
          %s173 = scalar_lea.vmem [#allocation3], %s172
          %s174 = smul.u32 32, %s25
          %s175 = smul.u32 4, %s27
          %177 = vsyncadd %s170, 0
          %s178 = smul.addr %s174, 4
          %s179 = sadd.s32 %s175, %s178
          %s180 = smul.addr %s26, 256
          %s181 = sadd.s32 %s179, %s180
          %s182 = smul.addr %s181, 4
          %s183 = scalar_lea.hbm %s0, %s182
          %s184 = sshll.u32 %s183, 4
          %s185 = int_to_ptr.hbm [resolvable:$true] %s184
          %s186 = sshll.u32 %s173, 4
          %s187 = int_to_ptr.vmem [resolvable:$true] %s186
          %192 = dma.hbm_to_vmem [thread:$0]  %s185, 8192, %s187, %s170, 256, 256, 16
        $region20: #{tpu_custom_call.1} parent=15 // pred_fallthru
          _
        // Predicated region
        $region21: #{tpu_custom_call.1} parent=15 // pred_check
          %p193 = pneg %p89
        $region22: #{tpu_custom_call.1} parent=15 // pred_check_branch
          %195 = sbr.rel (%p193) target = $region24
        $region23: #{tpu_custom_call.1} parent=15 // pred_region
          %s196 = sand.u32 %s18, 1
          %s197 = scalar_lea.sflag [#allocation7], %s196
          %s198 = sand.u32 %s79, 1
          %s199 = smul.addr %s198, 256
          %s200 = scalar_lea.vmem [#allocation6], %s199
          %s201 = smul.u32 64, %s27
          %203 = vsyncadd %s197, 0
          %s204 = smul.addr %s26, 64
          %s205 = sadd.s32 %s201, %s204
          %s206 = smul.addr %s205, 4
          %s207 = scalar_lea.hbm %s1, %s206
          %s208 = sshll.u32 %s207, 4
          %s209 = int_to_ptr.hbm [resolvable:$true] %s208
          %s210 = sshll.u32 %s200, 4
          %s211 = int_to_ptr.vmem [resolvable:$true] %s210
          %216 = dma.hbm_to_vmem [thread:$0]  %s209, 4096, %s211, %s197, 64, 64, 4
        $region24: #{tpu_custom_call.1} parent=15 // pred_fallthru
          _
        // Predicated region
        $region25: #{tpu_custom_call.1} parent=15 // pred_check
          %p217 = pneg %p115
        $region26: #{tpu_custom_call.1} parent=15 // pred_check_branch
          %219 = sbr.rel (%p217) target = $region28
        $region27: #{tpu_custom_call.1} parent=15 // pred_region
          %s220 = sand.u32 %s18, 1
          %s221 = scalar_lea.sflag [#allocation7], %s220
          %s222 = sand.u32 %s105, 1
          %s223 = smul.addr %s222, 256
          %s224 = scalar_lea.vmem [#allocation8], %s223
          %s225 = smul.u32 32, %s25
          %227 = vsyncadd %s221, 0
          %s228 = smul.addr %s225, 8
          %s229 = scalar_lea.hbm %s2, %s228
          %s230 = sshll.u32 %s229, 4
          %s231 = int_to_ptr.hbm [resolvable:$true] %s230
          %s232 = sshll.u32 %s224, 4
          %s233 = int_to_ptr.vmem [resolvable:$true] %s232
          %238 = dma.hbm_to_vmem [thread:$0]  %s231, 4096, %s233, %s221, 128, 128, 8
        $region28: #{tpu_custom_call.1} parent=15 // pred_fallthru
          _
      $region16: #{tpu_custom_call.1} parent=5 // pred_fallthru
        _
      %p239 = scmp.le.s32.totalorder 1, %s18
      %p240 = scmp.lt.s32.totalorder %s18, 9
      %p241 = pnand %p239, %p240
      %p242 = pneg %p241
      // Predicated region
      $region29: #{tpu_custom_call.1} parent=5 // pred_check
        _
      $region30: #{tpu_custom_call.1} parent=5 // pred_check_branch
        %244 = sbr.rel (%p241) target = $region32
      $region31: #{tpu_custom_call.1} parent=5 // pred_region
        %s245 = ssub.s32 %s18, 1
        %s246 = sand.u32 %s54, 1
        %s247 = scalar_lea.sflag [#allocation4], %s246
        %s248 = sand.u32 %s54, 1
        %s249 = smul.addr %s248, 512
        %s250 = scalar_lea.vmem [#allocation3], %s249
        // Predicated region
        $region33: #{tpu_custom_call.1} parent=31 // pred_check
          %p251 = pneg %p67
        $region34: #{tpu_custom_call.1} parent=31 // pred_check_branch
          %253 = sbr.rel (%p251) target = $region36
        $region35: #{tpu_custom_call.1} parent=31 // pred_region
          %255 = dma.done %s247, 8192
        $region36: #{tpu_custom_call.1} parent=31 // pred_fallthru
          _
        %s256 = sand.u32 %s23, 1
        %s257 = scalar_lea.sflag [#allocation7], %s256
        %s258 = sand.u32 %s82, 1
        %s259 = smul.addr %s258, 256
        %s260 = scalar_lea.vmem [#allocation6], %s259
        // Predicated region
        $region37: #{tpu_custom_call.1} parent=31 // pred_check
          %p261 = pneg %p95
        $region38: #{tpu_custom_call.1} parent=31 // pred_check_branch
          %263 = sbr.rel (%p261) target = $region40
        $region39: #{tpu_custom_call.1} parent=31 // pred_region
          %265 = dma.done %s257, 4096
        $region40: #{tpu_custom_call.1} parent=31 // pred_fallthru
          _
        %s266 = sand.u32 %s23, 1
        %s267 = scalar_lea.sflag [#allocation7], %s266
        %s268 = sand.u32 %s108, 1
        %s269 = smul.addr %s268, 256
        %s270 = scalar_lea.vmem [#allocation8], %s269
        // Predicated region
        $region41: #{tpu_custom_call.1} parent=31 // pred_check
          %p271 = pneg %p121
        $region42: #{tpu_custom_call.1} parent=31 // pred_check_branch
          %273 = sbr.rel (%p271) target = $region44
        $region43: #{tpu_custom_call.1} parent=31 // pred_region
          %275 = dma.done %s267, 4096
        $region44: #{tpu_custom_call.1} parent=31 // pred_fallthru
          _
        %s276 = sand.u32 %s54, 1
        %s277 = scalar_lea.sflag [#allocation4], %s276
        %s278 = sand.u32 %s54, 1
        %s279 = smul.addr %s278, 512
        %s280 = scalar_lea.vmem [#allocation3], %s279
        %p281 = pneg %p67
        %p282 = pneg %p64
        %s283 = sand.u32 %s23, 1
        %s284 = scalar_lea.sflag [#allocation7], %s283
        %s285 = sand.u32 %s82, 1
        %s286 = smul.addr %s285, 256
        %s287 = scalar_lea.vmem [#allocation6], %s286
        %p288 = pneg %p95
        %p289 = pneg %p92
        %s290 = sand.u32 %s23, 1
        %s291 = scalar_lea.sflag [#allocation7], %s290
        %s292 = sand.u32 %s108, 1
        %s293 = smul.addr %s292, 256
        %s294 = scalar_lea.vmem [#allocation8], %s293
        %p295 = pneg %p121
        %p296 = pneg %p118
        %p297 = pneg %p147
        %p298 = pneg %p144
        %s299 = sand.u32 %s134, 1
        %s300 = scalar_lea.sflag [#allocation5], %s299
        %s301 = sand.u32 %s134, 1
        %s302 = smul.addr %s301, 256
        %s303 = scalar_lea.vmem [#allocation9], %s302
        %s304 = smul.u32 32, %s28
        %s305 = smul.u32 4, %s30
        %s306 = smul.u32 64, %s30
        %s307 = smul.u32 32, %s28
        %s308 = smul.u32 32, %s28
        %p309 = scmp.eq.s32.totalorder %s29, 0
        %p310 = scmp.eq.s32.totalorder %s30, 0
        %p311 = pnand %p309, %p310
        %p312 = pneg %p311
        // Predicated region
        $region45: #{tpu_custom_call.1} parent=31 // pred_check
          _
        $region46: #{tpu_custom_call.1} parent=31 // pred_check_branch
          %314 = sbr.rel (%p311) target = $region48
        $region47: #{tpu_custom_call.1} parent=31 // pred_region
          %v315 = vld [vmem:[%s270] sm:$0xff]
          %v316 = vld [vmem:[%s270 + $0x8] sm:$0xff]
          %v317 = vld [vmem:[%s270 + $0x10] sm:$0xff]
          %v318 = vld [vmem:[%s270 + $0x18] sm:$0xff]
          %v319 = vld [vmem:[%s270 + $0x20] sm:$0xff]
          %v320 = vld [vmem:[%s270 + $0x28] sm:$0xff]
          %v321 = vld [vmem:[%s270 + $0x30] sm:$0xff]
          %v322 = vld [vmem:[%s270 + $0x38] sm:$0xff]
          %v323 = vld [vmem:[%s270 + $0x40] sm:$0xff]
          %v324 = vld [vmem:[%s270 + $0x48] sm:$0xff]
          %v325 = vld [vmem:[%s270 + $0x50] sm:$0xff]
          %v326 = vld [vmem:[%s270 + $0x58] sm:$0xff]
          %v327 = vld [vmem:[%s270 + $0x60] sm:$0xff]
          %v328 = vld [vmem:[%s270 + $0x68] sm:$0xff]
          %v329 = vld [vmem:[%s270 + $0x70] sm:$0xff]
          %v330 = vld [vmem:[%s270 + $0x78] sm:$0xff]
          %v331 = vld [vmem:[%s270 + $0x80] sm:$0xff]
          %v332 = vld [vmem:[%s270 + $0x88] sm:$0xff]
          %v333 = vld [vmem:[%s270 + $0x90] sm:$0xff]
          %v334 = vld [vmem:[%s270 + $0x98] sm:$0xff]
          %v335 = vld [vmem:[%s270 + $0xa0] sm:$0xff]
          %v336 = vld [vmem:[%s270 + $0xa8] sm:$0xff]
          %v337 = vld [vmem:[%s270 + $0xb0] sm:$0xff]
          %v338 = vld [vmem:[%s270 + $0xb8] sm:$0xff]
          %v339 = vld [vmem:[%s270 + $0xc0] sm:$0xff]
          %v340 = vld [vmem:[%s270 + $0xc8] sm:$0xff]
          %v341 = vld [vmem:[%s270 + $0xd0] sm:$0xff]
          %v342 = vld [vmem:[%s270 + $0xd8] sm:$0xff]
          %v343 = vld [vmem:[%s270 + $0xe0] sm:$0xff]
          %v344 = vld [vmem:[%s270 + $0xe8] sm:$0xff]
          %v345 = vld [vmem:[%s270 + $0xf0] sm:$0xff]
          %v346 = vld [vmem:[%s270 + $0xf8] sm:$0xff]
          %347 = vst [vmem:[#allocation2] sm:$0xff] %v315
          %348 = vst [vmem:[#allocation2 + $0x8] sm:$0xff] %v316
          %349 = vst [vmem:[#allocation2 + $0x10] sm:$0xff] %v317
          %350 = vst [vmem:[#allocation2 + $0x18] sm:$0xff] %v318
          %351 = vst [vmem:[#allocation2 + $0x20] sm:$0xff] %v319
          %352 = vst [vmem:[#allocation2 + $0x28] sm:$0xff] %v320
          %353 = vst [vmem:[#allocation2 + $0x30] sm:$0xff] %v321
          %354 = vst [vmem:[#allocation2 + $0x38] sm:$0xff] %v322
          %355 = vst [vmem:[#allocation2 + $0x40] sm:$0xff] %v323
          %356 = vst [vmem:[#allocation2 + $0x48] sm:$0xff] %v324
          %357 = vst [vmem:[#allocation2 + $0x50] sm:$0xff] %v325
          %358 = vst [vmem:[#allocation2 + $0x58] sm:$0xff] %v326
          %359 = vst [vmem:[#allocation2 + $0x60] sm:$0xff] %v327
          %360 = vst [vmem:[#allocation2 + $0x68] sm:$0xff] %v328
          %361 = vst [vmem:[#allocation2 + $0x70] sm:$0xff] %v329
          %362 = vst [vmem:[#allocation2 + $0x78] sm:$0xff] %v330
          %363 = vst [vmem:[#allocation2 + $0x80] sm:$0xff] %v331
          %364 = vst [vmem:[#allocation2 + $0x88] sm:$0xff] %v332
          %365 = vst [vmem:[#allocation2 + $0x90] sm:$0xff] %v333
          %366 = vst [vmem:[#allocation2 + $0x98] sm:$0xff] %v334
          %367 = vst [vmem:[#allocation2 + $0xa0] sm:$0xff] %v335
          %368 = vst [vmem:[#allocation2 + $0xa8] sm:$0xff] %v336
          %369 = vst [vmem:[#allocation2 + $0xb0] sm:$0xff] %v337
          %370 = vst [vmem:[#allocation2 + $0xb8] sm:$0xff] %v338
          %371 = vst [vmem:[#allocation2 + $0xc0] sm:$0xff] %v339
          %372 = vst [vmem:[#allocation2 + $0xc8] sm:$0xff] %v340
          %373 = vst [vmem:[#allocation2 + $0xd0] sm:$0xff] %v341
          %374 = vst [vmem:[#allocation2 + $0xd8] sm:$0xff] %v342
          %375 = vst [vmem:[#allocation2 + $0xe0] sm:$0xff] %v343
          %376 = vst [vmem:[#allocation2 + $0xe8] sm:$0xff] %v344
          %377 = vst [vmem:[#allocation2 + $0xf0] sm:$0xff] %v345
          %378 = vst [vmem:[#allocation2 + $0xf8] sm:$0xff] %v346
        $region48: #{tpu_custom_call.1} parent=31 // pred_fallthru
          _
        %v379 = vld [vmem:[#allocation2] sm:$0xff]
        %v380 = vld [vmem:[#allocation2 + $0x8] sm:$0xff]
        %v381 = vld [vmem:[#allocation2 + $0x10] sm:$0xff]
        %v382 = vld [vmem:[#allocation2 + $0x18] sm:$0xff]
        %v383 = vld [vmem:[#allocation2 + $0x20] sm:$0xff]
        %v384 = vld [vmem:[#allocation2 + $0x28] sm:$0xff]
        %v385 = vld [vmem:[#allocation2 + $0x30] sm:$0xff]
        %v386 = vld [vmem:[#allocation2 + $0x38] sm:$0xff]
        %v387 = vld [vmem:[#allocation2 + $0x40] sm:$0xff]
        %v388 = vld [vmem:[#allocation2 + $0x48] sm:$0xff]
        %v389 = vld [vmem:[#allocation2 + $0x50] sm:$0xff]
        %v390 = vld [vmem:[#allocation2 + $0x58] sm:$0xff]
        %v391 = vld [vmem:[#allocation2 + $0x60] sm:$0xff]
        %v392 = vld [vmem:[#allocation2 + $0x68] sm:$0xff]
        %v393 = vld [vmem:[#allocation2 + $0x70] sm:$0xff]
        %v394 = vld [vmem:[#allocation2 + $0x78] sm:$0xff]
        %v395 = vld [vmem:[#allocation2 + $0x80] sm:$0xff]
        %v396 = vld [vmem:[#allocation2 + $0x88] sm:$0xff]
        %v397 = vld [vmem:[#allocation2 + $0x90] sm:$0xff]
        %v398 = vld [vmem:[#allocation2 + $0x98] sm:$0xff]
        %v399 = vld [vmem:[#allocation2 + $0xa0] sm:$0xff]
        %v400 = vld [vmem:[#allocation2 + $0xa8] sm:$0xff]
        %v401 = vld [vmem:[#allocation2 + $0xb0] sm:$0xff]
        %v402 = vld [vmem:[#allocation2 + $0xb8] sm:$0xff]
        %v403 = vld [vmem:[#allocation2 + $0xc0] sm:$0xff]
        %v404 = vld [vmem:[#allocation2 + $0xc8] sm:$0xff]
        %v405 = vld [vmem:[#allocation2 + $0xd0] sm:$0xff]
        %v406 = vld [vmem:[#allocation2 + $0xd8] sm:$0xff]
        %v407 = vld [vmem:[#allocation2 + $0xe0] sm:$0xff]
        %v408 = vld [vmem:[#allocation2 + $0xe8] sm:$0xff]
        %v409 = vld [vmem:[#allocation2 + $0xf0] sm:$0xff]
        %v410 = vld [vmem:[#allocation2 + $0xf8] sm:$0xff]
        %v411 = vld [vmem:[%s250] sm:$0xff]
        %v412 = vld [vmem:[%s250 + $0x8] sm:$0xff]
        %v413 = vld [vmem:[%s250 + $0x10] sm:$0xff]
        %v414 = vld [vmem:[%s250 + $0x18] sm:$0xff]
        %v415 = vld [vmem:[%s250 + $0x20] sm:$0xff]
        %v416 = vld [vmem:[%s250 + $0x28] sm:$0xff]
        %v417 = vld [vmem:[%s250 + $0x30] sm:$0xff]
        %v418 = vld [vmem:[%s250 + $0x38] sm:$0xff]
        %v419 = vld [vmem:[%s250 + $0x40] sm:$0xff]
        %v420 = vld [vmem:[%s250 + $0x48] sm:$0xff]
        %v421 = vld [vmem:[%s250 + $0x50] sm:$0xff]
        %v422 = vld [vmem:[%s250 + $0x58] sm:$0xff]
        %v423 = vld [vmem:[%s250 + $0x60] sm:$0xff]
        %v424 = vld [vmem:[%s250 + $0x68] sm:$0xff]
        %v425 = vld [vmem:[%s250 + $0x70] sm:$0xff]
        %v426 = vld [vmem:[%s250 + $0x78] sm:$0xff]
        %v427 = vld [vmem:[%s250 + $0x80] sm:$0xff]
        %v428 = vld [vmem:[%s250 + $0x88] sm:$0xff]
        %v429 = vld [vmem:[%s250 + $0x90] sm:$0xff]
        %v430 = vld [vmem:[%s250 + $0x98] sm:$0xff]
        %v431 = vld [vmem:[%s250 + $0xa0] sm:$0xff]
        %v432 = vld [vmem:[%s250 + $0xa8] sm:$0xff]
        %v433 = vld [vmem:[%s250 + $0xb0] sm:$0xff]
        %v434 = vld [vmem:[%s250 + $0xb8] sm:$0xff]
        %v435 = vld [vmem:[%s250 + $0xc0] sm:$0xff]
        %v436 = vld [vmem:[%s250 + $0xc8] sm:$0xff]
        %v437 = vld [vmem:[%s250 + $0xd0] sm:$0xff]
        %v438 = vld [vmem:[%s250 + $0xd8] sm:$0xff]
        %v439 = vld [vmem:[%s250 + $0xe0] sm:$0xff]
        %v440 = vld [vmem:[%s250 + $0xe8] sm:$0xff]
        %v441 = vld [vmem:[%s250 + $0xf0] sm:$0xff]
        %v442 = vld [vmem:[%s250 + $0xf8] sm:$0xff]
        %v443 = vld [vmem:[%s250 + $0x100] sm:$0xff]
        %v444 = vld [vmem:[%s250 + $0x108] sm:$0xff]
        %v445 = vld [vmem:[%s250 + $0x110] sm:$0xff]
        %v446 = vld [vmem:[%s250 + $0x118] sm:$0xff]
        %v447 = vld [vmem:[%s250 + $0x120] sm:$0xff]
        %v448 = vld [vmem:[%s250 + $0x128] sm:$0xff]
        %v449 = vld [vmem:[%s250 + $0x130] sm:$0xff]
        %v450 = vld [vmem:[%s250 + $0x138] sm:$0xff]
        %v451 = vld [vmem:[%s250 + $0x140] sm:$0xff]
        %v452 = vld [vmem:[%s250 + $0x148] sm:$0xff]
        %v453 = vld [vmem:[%s250 + $0x150] sm:$0xff]
        %v454 = vld [vmem:[%s250 + $0x158] sm:$0xff]
        %v455 = vld [vmem:[%s250 + $0x160] sm:$0xff]
        %v456 = vld [vmem:[%s250 + $0x168] sm:$0xff]
        %v457 = vld [vmem:[%s250 + $0x170] sm:$0xff]
        %v458 = vld [vmem:[%s250 + $0x178] sm:$0xff]
        %v459 = vld [vmem:[%s250 + $0x180] sm:$0xff]
        %v460 = vld [vmem:[%s250 + $0x188] sm:$0xff]
        %v461 = vld [vmem:[%s250 + $0x190] sm:$0xff]
        %v462 = vld [vmem:[%s250 + $0x198] sm:$0xff]
        %v463 = vld [vmem:[%s250 + $0x1a0] sm:$0xff]
        %v464 = vld [vmem:[%s250 + $0x1a8] sm:$0xff]
        %v465 = vld [vmem:[%s250 + $0x1b0] sm:$0xff]
        %v466 = vld [vmem:[%s250 + $0x1b8] sm:$0xff]
        %v467 = vld [vmem:[%s250 + $0x1c0] sm:$0xff]
        %v468 = vld [vmem:[%s250 + $0x1c8] sm:$0xff]
        %v469 = vld [vmem:[%s250 + $0x1d0] sm:$0xff]
        %v470 = vld [vmem:[%s250 + $0x1d8] sm:$0xff]
        %v471 = vld [vmem:[%s250 + $0x1e0] sm:$0xff]
        %v472 = vld [vmem:[%s250 + $0x1e8] sm:$0xff]
        %v473 = vld [vmem:[%s250 + $0x1f0] sm:$0xff]
        %v474 = vld [vmem:[%s250 + $0x1f8] sm:$0xff]
        %v475 = vld [vmem:[%s260] sm:$0xf]
        %v476 = vld [vmem:[%s260 + $0x4] sm:$0xf]
        %v477 = vld [vmem:[%s260 + $0x8] sm:$0xf]
        %v478 = vld [vmem:[%s260 + $0xc] sm:$0xf]
        %v479 = vld [vmem:[%s260 + $0x10] sm:$0xf]
        %v480 = vld [vmem:[%s260 + $0x14] sm:$0xf]
        %v481 = vld [vmem:[%s260 + $0x18] sm:$0xf]
        %v482 = vld [vmem:[%s260 + $0x1c] sm:$0xf]
        %v483 = vld [vmem:[%s260 + $0x20] sm:$0xf]
        %v484 = vld [vmem:[%s260 + $0x24] sm:$0xf]
        %v485 = vld [vmem:[%s260 + $0x28] sm:$0xf]
        %v486 = vld [vmem:[%s260 + $0x2c] sm:$0xf]
        %v487 = vld [vmem:[%s260 + $0x30] sm:$0xf]
        %v488 = vld [vmem:[%s260 + $0x34] sm:$0xf]
        %v489 = vld [vmem:[%s260 + $0x38] sm:$0xf]
        %v490 = vld [vmem:[%s260 + $0x3c] sm:$0xf]
        %v491 = vld [vmem:[%s260 + $0x40] sm:$0xf]
        %v492 = vld [vmem:[%s260 + $0x44] sm:$0xf]
        %v493 = vld [vmem:[%s260 + $0x48] sm:$0xf]
        %v494 = vld [vmem:[%s260 + $0x4c] sm:$0xf]
        %v495 = vld [vmem:[%s260 + $0x50] sm:$0xf]
        %v496 = vld [vmem:[%s260 + $0x54] sm:$0xf]
        %v497 = vld [vmem:[%s260 + $0x58] sm:$0xf]
        %v498 = vld [vmem:[%s260 + $0x5c] sm:$0xf]
        %v499 = vld [vmem:[%s260 + $0x60] sm:$0xf]
        %v500 = vld [vmem:[%s260 + $0x64] sm:$0xf]
        %v501 = vld [vmem:[%s260 + $0x68] sm:$0xf]
        %v502 = vld [vmem:[%s260 + $0x6c] sm:$0xf]
        %v503 = vld [vmem:[%s260 + $0x70] sm:$0xf]
        %v504 = vld [vmem:[%s260 + $0x74] sm:$0xf]
        %v505 = vld [vmem:[%s260 + $0x78] sm:$0xf]
        %v506 = vld [vmem:[%s260 + $0x7c] sm:$0xf]
        %v507 = vld [vmem:[%s260 + $0x80] sm:$0xf]
        %v508 = vld [vmem:[%s260 + $0x84] sm:$0xf]
        %v509 = vld [vmem:[%s260 + $0x88] sm:$0xf]
        %v510 = vld [vmem:[%s260 + $0x8c] sm:$0xf]
        %v511 = vld [vmem:[%s260 + $0x90] sm:$0xf]
        %v512 = vld [vmem:[%s260 + $0x94] sm:$0xf]
        %v513 = vld [vmem:[%s260 + $0x98] sm:$0xf]
        %v514 = vld [vmem:[%s260 + $0x9c] sm:$0xf]
        %v515 = vld [vmem:[%s260 + $0xa0] sm:$0xf]
        %v516 = vld [vmem:[%s260 + $0xa4] sm:$0xf]
        %v517 = vld [vmem:[%s260 + $0xa8] sm:$0xf]
        %v518 = vld [vmem:[%s260 + $0xac] sm:$0xf]
        %v519 = vld [vmem:[%s260 + $0xb0] sm:$0xf]
        %v520 = vld [vmem:[%s260 + $0xb4] sm:$0xf]
        %v521 = vld [vmem:[%s260 + $0xb8] sm:$0xf]
        %v522 = vld [vmem:[%s260 + $0xbc] sm:$0xf]
        %v523 = vld [vmem:[%s260 + $0xc0] sm:$0xf]
        %v524 = vld [vmem:[%s260 + $0xc4] sm:$0xf]
        %v525 = vld [vmem:[%s260 + $0xc8] sm:$0xf]
        %v526 = vld [vmem:[%s260 + $0xcc] sm:$0xf]
        %v527 = vld [vmem:[%s260 + $0xd0] sm:$0xf]
        %v528 = vld [vmem:[%s260 + $0xd4] sm:$0xf]
        %v529 = vld [vmem:[%s260 + $0xd8] sm:$0xf]
        %v530 = vld [vmem:[%s260 + $0xdc] sm:$0xf]
        %v531 = vld [vmem:[%s260 + $0xe0] sm:$0xf]
        %v532 = vld [vmem:[%s260 + $0xe4] sm:$0xf]
        %v533 = vld [vmem:[%s260 + $0xe8] sm:$0xf]
        %v534 = vld [vmem:[%s260 + $0xec] sm:$0xf]
        %v535 = vld [vmem:[%s260 + $0xf0] sm:$0xf]
        %v536 = vld [vmem:[%s260 + $0xf4] sm:$0xf]
        %v537 = vld [vmem:[%s260 + $0xf8] sm:$0xf]
        %v538 = vld [vmem:[%s260 + $0xfc] sm:$0xf]
        %v603 = vunpack.c.l.b16 %v411
        %v604 = vunpack.c.h.b16 %v411
        %v605 = vunpack.c.l.b16 %v412
        %v606 = vunpack.c.h.b16 %v412
        %v607 = vunpack.c.l.b16 %v413
        %v608 = vunpack.c.h.b16 %v413
        %v609 = vunpack.c.l.b16 %v414
        %v610 = vunpack.c.h.b16 %v414
        %v611 = vunpack.c.l.b16 %v415
        %v612 = vunpack.c.h.b16 %v415
        %v613 = vunpack.c.l.b16 %v416
        %v614 = vunpack.c.h.b16 %v416
        %v615 = vunpack.c.l.b16 %v417
        %v616 = vunpack.c.h.b16 %v417
        %v617 = vunpack.c.l.b16 %v418
        %v618 = vunpack.c.h.b16 %v418
        %v619 = vunpack.c.l.b16 %v419
        %v620 = vunpack.c.h.b16 %v419
        %v621 = vunpack.c.l.b16 %v420
        %v622 = vunpack.c.h.b16 %v420
        %v623 = vunpack.c.l.b16 %v421
        %v624 = vunpack.c.h.b16 %v421
        %v625 = vunpack.c.l.b16 %v422
        %v626 = vunpack.c.h.b16 %v422
        %v627 = vunpack.c.l.b16 %v423
        %v628 = vunpack.c.h.b16 %v423
        %v629 = vunpack.c.l.b16 %v424
        %v630 = vunpack.c.h.b16 %v424
        %v631 = vunpack.c.l.b16 %v425
        %v632 = vunpack.c.h.b16 %v425
        %v633 = vunpack.c.l.b16 %v426
        %v634 = vunpack.c.h.b16 %v426
        %v635 = vunpack.c.l.b16 %v427
        %v636 = vunpack.c.h.b16 %v427
        %v637 = vunpack.c.l.b16 %v428
        %v638 = vunpack.c.h.b16 %v428
        %v639 = vunpack.c.l.b16 %v429
        %v640 = vunpack.c.h.b16 %v429
        %v641 = vunpack.c.l.b16 %v430
        %v642 = vunpack.c.h.b16 %v430
        %v643 = vunpack.c.l.b16 %v431
        %v644 = vunpack.c.h.b16 %v431
        %v645 = vunpack.c.l.b16 %v432
        %v646 = vunpack.c.h.b16 %v432
        %v647 = vunpack.c.l.b16 %v433
        %v648 = vunpack.c.h.b16 %v433
        %v649 = vunpack.c.l.b16 %v434
        %v650 = vunpack.c.h.b16 %v434
        %v651 = vunpack.c.l.b16 %v435
        %v652 = vunpack.c.h.b16 %v435
        %v653 = vunpack.c.l.b16 %v436
        %v654 = vunpack.c.h.b16 %v436
        %v655 = vunpack.c.l.b16 %v437
        %v656 = vunpack.c.h.b16 %v437
        %v657 = vunpack.c.l.b16 %v438
        %v658 = vunpack.c.h.b16 %v438
        %v659 = vunpack.c.l.b16 %v439
        %v660 = vunpack.c.h.b16 %v439
        %v661 = vunpack.c.l.b16 %v440
        %v662 = vunpack.c.h.b16 %v440
        %v663 = vunpack.c.l.b16 %v441
        %v664 = vunpack.c.h.b16 %v441
        %v665 = vunpack.c.l.b16 %v442
        %v666 = vunpack.c.h.b16 %v442
        %v667 = vunpack.c.l.b16 %v443
        %v668 = vunpack.c.h.b16 %v443
        %v669 = vunpack.c.l.b16 %v444
        %v670 = vunpack.c.h.b16 %v444
        %v671 = vunpack.c.l.b16 %v445
        %v672 = vunpack.c.h.b16 %v445
        %v673 = vunpack.c.l.b16 %v446
        %v674 = vunpack.c.h.b16 %v446
        %v675 = vunpack.c.l.b16 %v447
        %v676 = vunpack.c.h.b16 %v447
        %v677 = vunpack.c.l.b16 %v448
        %v678 = vunpack.c.h.b16 %v448
        %v679 = vunpack.c.l.b16 %v449
        %v680 = vunpack.c.h.b16 %v449
        %v681 = vunpack.c.l.b16 %v450
        %v682 = vunpack.c.h.b16 %v450
        %v683 = vunpack.c.l.b16 %v451
        %v684 = vunpack.c.h.b16 %v451
        %v685 = vunpack.c.l.b16 %v452
        %v686 = vunpack.c.h.b16 %v452
        %v687 = vunpack.c.l.b16 %v453
        %v688 = vunpack.c.h.b16 %v453
        %v689 = vunpack.c.l.b16 %v454
        %v690 = vunpack.c.h.b16 %v454
        %v691 = vunpack.c.l.b16 %v455
        %v692 = vunpack.c.h.b16 %v455
        %v693 = vunpack.c.l.b16 %v456
        %v694 = vunpack.c.h.b16 %v456
        %v695 = vunpack.c.l.b16 %v457
        %v696 = vunpack.c.h.b16 %v457
        %v697 = vunpack.c.l.b16 %v458
        %v698 = vunpack.c.h.b16 %v458
        %v699 = vunpack.c.l.b16 %v459
        %v700 = vunpack.c.h.b16 %v459
        %v701 = vunpack.c.l.b16 %v460
        %v702 = vunpack.c.h.b16 %v460
        %v703 = vunpack.c.l.b16 %v461
        %v704 = vunpack.c.h.b16 %v461
        %v705 = vunpack.c.l.b16 %v462
        %v706 = vunpack.c.h.b16 %v462
        %v707 = vunpack.c.l.b16 %v463
        %v708 = vunpack.c.h.b16 %v463
        %v709 = vunpack.c.l.b16 %v464
        %v710 = vunpack.c.h.b16 %v464
        %v711 = vunpack.c.l.b16 %v465
        %v712 = vunpack.c.h.b16 %v465
        %v713 = vunpack.c.l.b16 %v466
        %v714 = vunpack.c.h.b16 %v466
        %v715 = vunpack.c.l.b16 %v467
        %v716 = vunpack.c.h.b16 %v467
        %v717 = vunpack.c.l.b16 %v468
        %v718 = vunpack.c.h.b16 %v468
        %v719 = vunpack.c.l.b16 %v469
        %v720 = vunpack.c.h.b16 %v469
        %v721 = vunpack.c.l.b16 %v470
        %v722 = vunpack.c.h.b16 %v470
        %v723 = vunpack.c.l.b16 %v471
        %v724 = vunpack.c.h.b16 %v471
        %v725 = vunpack.c.l.b16 %v472
        %v726 = vunpack.c.h.b16 %v472
        %v727 = vunpack.c.l.b16 %v473
        %v728 = vunpack.c.h.b16 %v473
        %v729 = vunpack.c.l.b16 %v474
        %v730 = vunpack.c.h.b16 %v474
        %v731 = vpack.c.b16 %v607, %v603
        %v732 = vpack.c.b16 %v608, %v604
        %v733 = vpack.c.b16 %v609, %v605
        %v734 = vpack.c.b16 %v610, %v606
        %v735 = vpack.c.b16 %v615, %v611
        %v736 = vpack.c.b16 %v616, %v612
        %v737 = vpack.c.b16 %v617, %v613
        %v738 = vpack.c.b16 %v618, %v614
        %v739 = vpack.c.b16 %v623, %v619
        %v740 = vpack.c.b16 %v624, %v620
        %v741 = vpack.c.b16 %v625, %v621
        %v742 = vpack.c.b16 %v626, %v622
        %v743 = vpack.c.b16 %v631, %v627
        %v744 = vpack.c.b16 %v632, %v628
        %v745 = vpack.c.b16 %v633, %v629
        %v746 = vpack.c.b16 %v634, %v630
        %v747 = vpack.c.b16 %v639, %v635
        %v748 = vpack.c.b16 %v640, %v636
        %v749 = vpack.c.b16 %v641, %v637
        %v750 = vpack.c.b16 %v642, %v638
        %v751 = vpack.c.b16 %v647, %v643
        %v752 = vpack.c.b16 %v648, %v644
        %v753 = vpack.c.b16 %v649, %v645
        %v754 = vpack.c.b16 %v650, %v646
        %v755 = vpack.c.b16 %v655, %v651
        %v756 = vpack.c.b16 %v656, %v652
        %v757 = vpack.c.b16 %v657, %v653
        %v758 = vpack.c.b16 %v658, %v654
        %v759 = vpack.c.b16 %v663, %v659
        %v760 = vpack.c.b16 %v664, %v660
        %v761 = vpack.c.b16 %v665, %v661
        %v762 = vpack.c.b16 %v666, %v662
        %v763 = vpack.c.b16 %v671, %v667
        %v764 = vpack.c.b16 %v672, %v668
        %v765 = vpack.c.b16 %v673, %v669
        %v766 = vpack.c.b16 %v674, %v670
        %v767 = vpack.c.b16 %v679, %v675
        %v768 = vpack.c.b16 %v680, %v676
        %v769 = vpack.c.b16 %v681, %v677
        %v770 = vpack.c.b16 %v682, %v678
        %v771 = vpack.c.b16 %v687, %v683
        %v772 = vpack.c.b16 %v688, %v684
        %v773 = vpack.c.b16 %v689, %v685
        %v774 = vpack.c.b16 %v690, %v686
        %v775 = vpack.c.b16 %v695, %v691
        %v776 = vpack.c.b16 %v696, %v692
        %v777 = vpack.c.b16 %v697, %v693
        %v778 = vpack.c.b16 %v698, %v694
        %v779 = vpack.c.b16 %v703, %v699
        %v780 = vpack.c.b16 %v704, %v700
        %v781 = vpack.c.b16 %v705, %v701
        %v782 = vpack.c.b16 %v706, %v702
        %v783 = vpack.c.b16 %v711, %v707
        %v784 = vpack.c.b16 %v712, %v708
        %v785 = vpack.c.b16 %v713, %v709
        %v786 = vpack.c.b16 %v714, %v710
        %v787 = vpack.c.b16 %v719, %v715
        %v788 = vpack.c.b16 %v720, %v716
        %v789 = vpack.c.b16 %v721, %v717
        %v790 = vpack.c.b16 %v722, %v718
        %v791 = vpack.c.b16 %v727, %v723
        %v792 = vpack.c.b16 %v728, %v724
        %v793 = vpack.c.b16 %v729, %v725
        %v794 = vpack.c.b16 %v730, %v726
        %v923 = vunpack.c.l.b16 %v475
        %v924 = vunpack.c.l.b16 %v476
        %v925 = vunpack.c.l.b16 %v477
        %v926 = vunpack.c.l.b16 %v478
        %v927 = vunpack.c.l.b16 %v479
        %v928 = vunpack.c.l.b16 %v480
        %v929 = vunpack.c.l.b16 %v481
        %v930 = vunpack.c.l.b16 %v482
        %v931 = vunpack.c.l.b16 %v483
        %v932 = vunpack.c.l.b16 %v484
        %v933 = vunpack.c.l.b16 %v485
        %v934 = vunpack.c.l.b16 %v486
        %v935 = vunpack.c.l.b16 %v487
        %v936 = vunpack.c.l.b16 %v488
        %v937 = vunpack.c.l.b16 %v489
        %v938 = vunpack.c.l.b16 %v490
        %v939 = vunpack.c.l.b16 %v491
        %v940 = vunpack.c.l.b16 %v492
        %v941 = vunpack.c.l.b16 %v493
        %v942 = vunpack.c.l.b16 %v494
        %v943 = vunpack.c.l.b16 %v495
        %v944 = vunpack.c.l.b16 %v496
        %v945 = vunpack.c.l.b16 %v497
        %v946 = vunpack.c.l.b16 %v498
        %v947 = vunpack.c.l.b16 %v499
        %v948 = vunpack.c.l.b16 %v500
        %v949 = vunpack.c.l.b16 %v501
        %v950 = vunpack.c.l.b16 %v502
        %v951 = vunpack.c.l.b16 %v503
        %v952 = vunpack.c.l.b16 %v504
        %v953 = vunpack.c.l.b16 %v505
        %v954 = vunpack.c.l.b16 %v506
        %v955 = vunpack.c.l.b16 %v507
        %v956 = vunpack.c.l.b16 %v508
        %v957 = vunpack.c.l.b16 %v509
        %v958 = vunpack.c.l.b16 %v510
        %v959 = vunpack.c.l.b16 %v511
        %v960 = vunpack.c.l.b16 %v512
        %v961 = vunpack.c.l.b16 %v513
        %v962 = vunpack.c.l.b16 %v514
        %v963 = vunpack.c.l.b16 %v515
        %v964 = vunpack.c.l.b16 %v516
        %v965 = vunpack.c.l.b16 %v517
        %v966 = vunpack.c.l.b16 %v518
        %v967 = vunpack.c.l.b16 %v519
        %v968 = vunpack.c.l.b16 %v520
        %v969 = vunpack.c.l.b16 %v521
        %v970 = vunpack.c.l.b16 %v522
        %v971 = vunpack.c.l.b16 %v523
        %v972 = vunpack.c.l.b16 %v524
        %v973 = vunpack.c.l.b16 %v525
        %v974 = vunpack.c.l.b16 %v526
        %v975 = vunpack.c.l.b16 %v527
        %v976 = vunpack.c.l.b16 %v528
        %v977 = vunpack.c.l.b16 %v529
        %v978 = vunpack.c.l.b16 %v530
        %v979 = vunpack.c.l.b16 %v531
        %v980 = vunpack.c.l.b16 %v532
        %v981 = vunpack.c.l.b16 %v533
        %v982 = vunpack.c.l.b16 %v534
        %v983 = vunpack.c.l.b16 %v535
        %v984 = vunpack.c.l.b16 %v536
        %v985 = vunpack.c.l.b16 %v537
        %v986 = vunpack.c.l.b16 %v538
        %v987 = vpack.c.b16 %v924, %v923
        %v988 = vpack.c.b16 %v926, %v925
        %v989 = vpack.c.b16 %v928, %v927
        %v990 = vpack.c.b16 %v930, %v929
        %v991 = vpack.c.b16 %v932, %v931
        %v992 = vpack.c.b16 %v934, %v933
        %v993 = vpack.c.b16 %v936, %v935
        %v994 = vpack.c.b16 %v938, %v937
        %v995 = vpack.c.b16 %v940, %v939
        %v996 = vpack.c.b16 %v942, %v941
        %v997 = vpack.c.b16 %v944, %v943
        %v998 = vpack.c.b16 %v946, %v945
        %v999 = vpack.c.b16 %v948, %v947
        %v1000 = vpack.c.b16 %v950, %v949
        %v1001 = vpack.c.b16 %v952, %v951
        %v1002 = vpack.c.b16 %v954, %v953
        %v1003 = vpack.c.b16 %v956, %v955
        %v1004 = vpack.c.b16 %v958, %v957
        %v1005 = vpack.c.b16 %v960, %v959
        %v1006 = vpack.c.b16 %v962, %v961
        %v1007 = vpack.c.b16 %v964, %v963
        %v1008 = vpack.c.b16 %v966, %v965
        %v1009 = vpack.c.b16 %v968, %v967
        %v1010 = vpack.c.b16 %v970, %v969
        %v1011 = vpack.c.b16 %v972, %v971
        %v1012 = vpack.c.b16 %v974, %v973
        %v1013 = vpack.c.b16 %v976, %v975
        %v1014 = vpack.c.b16 %v978, %v977
        %v1015 = vpack.c.b16 %v980, %v979
        %v1016 = vpack.c.b16 %v982, %v981
        %v1017 = vpack.c.b16 %v984, %v983
        %v1018 = vpack.c.b16 %v986, %v985
        %1051 = vmatpush.bf16.msra.mxu0 %v994
        %1052 = vmatpush.bf16.msra.mxu0 %v993
        %1053 = vmatpush.bf16.msra.mxu0 %v992
        %1054 = vmatpush.bf16.msra.mxu0 %v991
        %1055 = vmatpush.bf16.msra.mxu0 %v990
        %1056 = vmatpush.bf16.msra.mxu0 %v989
        %1057 = vmatpush.bf16.msra.mxu0 %v988
        %1058 = vmatpush.bf16.msra.mxu0 %v987
        %1059 = vmatmul.bf16.gmra.mxu0 %v731
        %v1060 = vpop.f32.mrf.mxu0
        %v1061 = vadd.f32 0.0, %v1060
        %v1062 = vpop.f32.mrf.mxu0
        %v1063 = vadd.f32 0.0, %v1062
        %1064 = vmatmul.bf16.gmra.mxu0 %v735
        %v1065 = vpop.f32.mrf.mxu0
        %v1066 = vadd.f32 0.0, %v1065
        %v1067 = vpop.f32.mrf.mxu0
        %v1068 = vadd.f32 0.0, %v1067
        %1069 = vmatmul.bf16.gmra.mxu0 %v739
        %v1070 = vpop.f32.mrf.mxu0
        %v1071 = vadd.f32 0.0, %v1070
        %v1072 = vpop.f32.mrf.mxu0
        %v1073 = vadd.f32 0.0, %v1072
        %1074 = vmatmul.bf16.gmra.mxu0 %v743
        %v1075 = vpop.f32.mrf.mxu0
        %v1076 = vadd.f32 0.0, %v1075
        %v1077 = vpop.f32.mrf.mxu0
        %v1078 = vadd.f32 0.0, %v1077
        %1079 = vmatmul.bf16.gmra.mxu0 %v747
        %v1080 = vpop.f32.mrf.mxu0
        %v1081 = vadd.f32 0.0, %v1080
        %v1082 = vpop.f32.mrf.mxu0
        %v1083 = vadd.f32 0.0, %v1082
        %1084 = vmatmul.bf16.gmra.mxu0 %v751
        %v1085 = vpop.f32.mrf.mxu0
        %v1086 = vadd.f32 0.0, %v1085
        %v1087 = vpop.f32.mrf.mxu0
        %v1088 = vadd.f32 0.0, %v1087
        %1089 = vmatmul.bf16.gmra.mxu0 %v755
        %v1090 = vpop.f32.mrf.mxu0
        %v1091 = vadd.f32 0.0, %v1090
        %v1092 = vpop.f32.mrf.mxu0
        %v1093 = vadd.f32 0.0, %v1092
        %1094 = vmatmul.bf16.gmra.mxu0 %v759
        %v1095 = vpop.f32.mrf.mxu0
        %v1096 = vadd.f32 0.0, %v1095
        %v1097 = vpop.f32.mrf.mxu0
        %v1098 = vadd.f32 0.0, %v1097
        %1099 = vmatmul.bf16.gmra.mxu0 %v763
        %v1100 = vpop.f32.mrf.mxu0
        %v1101 = vadd.f32 0.0, %v1100
        %v1102 = vpop.f32.mrf.mxu0
        %v1103 = vadd.f32 0.0, %v1102
        %1104 = vmatmul.bf16.gmra.mxu0 %v767
        %v1105 = vpop.f32.mrf.mxu0
        %v1106 = vadd.f32 0.0, %v1105
        %v1107 = vpop.f32.mrf.mxu0
        %v1108 = vadd.f32 0.0, %v1107
        %1109 = vmatmul.bf16.gmra.mxu0 %v771
        %v1110 = vpop.f32.mrf.mxu0
        %v1111 = vadd.f32 0.0, %v1110
        %v1112 = vpop.f32.mrf.mxu0
        %v1113 = vadd.f32 0.0, %v1112
        %1114 = vmatmul.bf16.gmra.mxu0 %v775
        %v1115 = vpop.f32.mrf.mxu0
        %v1116 = vadd.f32 0.0, %v1115
        %v1117 = vpop.f32.mrf.mxu0
        %v1118 = vadd.f32 0.0, %v1117
        %1119 = vmatmul.bf16.gmra.mxu0 %v779
        %v1120 = vpop.f32.mrf.mxu0
        %v1121 = vadd.f32 0.0, %v1120
        %v1122 = vpop.f32.mrf.mxu0
        %v1123 = vadd.f32 0.0, %v1122
        %1124 = vmatmul.bf16.gmra.mxu0 %v783
        %v1125 = vpop.f32.mrf.mxu0
        %v1126 = vadd.f32 0.0, %v1125
        %v1127 = vpop.f32.mrf.mxu0
        %v1128 = vadd.f32 0.0, %v1127
        %1129 = vmatmul.bf16.gmra.mxu0 %v787
        %v1130 = vpop.f32.mrf.mxu0
        %v1131 = vadd.f32 0.0, %v1130
        %v1132 = vpop.f32.mrf.mxu0
        %v1133 = vadd.f32 0.0, %v1132
        %1134 = vmatmul.bf16.gmra.mxu0 %v791
        %v1135 = vpop.f32.mrf.mxu0
        %v1136 = vadd.f32 0.0, %v1135
        %v1137 = vpop.f32.mrf.mxu0
        %v1138 = vadd.f32 0.0, %v1137
        %1139 = vdwg.mxu0
        %1140 = vmatpush.bf16.msra.mxu0 %v1002
        %1141 = vmatpush.bf16.msra.mxu0 %v1001
        %1142 = vmatpush.bf16.msra.mxu0 %v1000
        %1143 = vmatpush.bf16.msra.mxu0 %v999
        %1144 = vmatpush.bf16.msra.mxu0 %v998
        %1145 = vmatpush.bf16.msra.mxu0 %v997
        %1146 = vmatpush.bf16.msra.mxu0 %v996
        %1147 = vmatpush.bf16.msra.mxu0 %v995
        %1148 = vmatmul.bf16.gmra.mxu0 %v732
        %v1149 = vpop.f32.mrf.mxu0
        %v1150 = vadd.f32 %v1061, %v1149
        %v1151 = vpop.f32.mrf.mxu0
        %v1152 = vadd.f32 %v1063, %v1151
        %1153 = vmatmul.bf16.gmra.mxu0 %v736
        %v1154 = vpop.f32.mrf.mxu0
        %v1155 = vadd.f32 %v1066, %v1154
        %v1156 = vpop.f32.mrf.mxu0
        %v1157 = vadd.f32 %v1068, %v1156
        %1158 = vmatmul.bf16.gmra.mxu0 %v740
        %v1159 = vpop.f32.mrf.mxu0
        %v1160 = vadd.f32 %v1071, %v1159
        %v1161 = vpop.f32.mrf.mxu0
        %v1162 = vadd.f32 %v1073, %v1161
        %1163 = vmatmul.bf16.gmra.mxu0 %v744
        %v1164 = vpop.f32.mrf.mxu0
        %v1165 = vadd.f32 %v1076, %v1164
        %v1166 = vpop.f32.mrf.mxu0
        %v1167 = vadd.f32 %v1078, %v1166
        %1168 = vmatmul.bf16.gmra.mxu0 %v748
        %v1169 = vpop.f32.mrf.mxu0
        %v1170 = vadd.f32 %v1081, %v1169
        %v1171 = vpop.f32.mrf.mxu0
        %v1172 = vadd.f32 %v1083, %v1171
        %1173 = vmatmul.bf16.gmra.mxu0 %v752
        %v1174 = vpop.f32.mrf.mxu0
        %v1175 = vadd.f32 %v1086, %v1174
        %v1176 = vpop.f32.mrf.mxu0
        %v1177 = vadd.f32 %v1088, %v1176
        %1178 = vmatmul.bf16.gmra.mxu0 %v756
        %v1179 = vpop.f32.mrf.mxu0
        %v1180 = vadd.f32 %v1091, %v1179
        %v1181 = vpop.f32.mrf.mxu0
        %v1182 = vadd.f32 %v1093, %v1181
        %1183 = vmatmul.bf16.gmra.mxu0 %v760
        %v1184 = vpop.f32.mrf.mxu0
        %v1185 = vadd.f32 %v1096, %v1184
        %v1186 = vpop.f32.mrf.mxu0
        %v1187 = vadd.f32 %v1098, %v1186
        %1188 = vmatmul.bf16.gmra.mxu0 %v764
        %v1189 = vpop.f32.mrf.mxu0
        %v1190 = vadd.f32 %v1101, %v1189
        %v1191 = vpop.f32.mrf.mxu0
        %v1192 = vadd.f32 %v1103, %v1191
        %1193 = vmatmul.bf16.gmra.mxu0 %v768
        %v1194 = vpop.f32.mrf.mxu0
        %v1195 = vadd.f32 %v1106, %v1194
        %v1196 = vpop.f32.mrf.mxu0
        %v1197 = vadd.f32 %v1108, %v1196
        %1198 = vmatmul.bf16.gmra.mxu0 %v772
        %v1199 = vpop.f32.mrf.mxu0
        %v1200 = vadd.f32 %v1111, %v1199
        %v1201 = vpop.f32.mrf.mxu0
        %v1202 = vadd.f32 %v1113, %v1201
        %1203 = vmatmul.bf16.gmra.mxu0 %v776
        %v1204 = vpop.f32.mrf.mxu0
        %v1205 = vadd.f32 %v1116, %v1204
        %v1206 = vpop.f32.mrf.mxu0
        %v1207 = vadd.f32 %v1118, %v1206
        %1208 = vmatmul.bf16.gmra.mxu0 %v780
        %v1209 = vpop.f32.mrf.mxu0
        %v1210 = vadd.f32 %v1121, %v1209
        %v1211 = vpop.f32.mrf.mxu0
        %v1212 = vadd.f32 %v1123, %v1211
        %1213 = vmatmul.bf16.gmra.mxu0 %v784
        %v1214 = vpop.f32.mrf.mxu0
        %v1215 = vadd.f32 %v1126, %v1214
        %v1216 = vpop.f32.mrf.mxu0
        %v1217 = vadd.f32 %v1128, %v1216
        %1218 = vmatmul.bf16.gmra.mxu0 %v788
        %v1219 = vpop.f32.mrf.mxu0
        %v1220 = vadd.f32 %v1131, %v1219
        %v1221 = vpop.f32.mrf.mxu0
        %v1222 = vadd.f32 %v1133, %v1221
        %1223 = vmatmul.bf16.gmra.mxu0 %v792
        %v1224 = vpop.f32.mrf.mxu0
        %v1225 = vadd.f32 %v1136, %v1224
        %v1226 = vpop.f32.mrf.mxu0
        %v1227 = vadd.f32 %v1138, %v1226
        %1228 = vdwg.mxu0
        %1229 = vmatpush.bf16.msra.mxu0 %v1010
        %1230 = vmatpush.bf16.msra.mxu0 %v1009
        %1231 = vmatpush.bf16.msra.mxu0 %v1008
        %1232 = vmatpush.bf16.msra.mxu0 %v1007
        %1233 = vmatpush.bf16.msra.mxu0 %v1006
        %1234 = vmatpush.bf16.msra.mxu0 %v1005
        %1235 = vmatpush.bf16.msra.mxu0 %v1004
        %1236 = vmatpush.bf16.msra.mxu0 %v1003
        %1237 = vmatmul.bf16.gmra.mxu0 %v733
        %v1238 = vpop.f32.mrf.mxu0
        %v1239 = vadd.f32 %v1150, %v1238
        %v1240 = vpop.f32.mrf.mxu0
        %v1241 = vadd.f32 %v1152, %v1240
        %1242 = vmatmul.bf16.gmra.mxu0 %v737
        %v1243 = vpop.f32.mrf.mxu0
        %v1244 = vadd.f32 %v1155, %v1243
        %v1245 = vpop.f32.mrf.mxu0
        %v1246 = vadd.f32 %v1157, %v1245
        %1247 = vmatmul.bf16.gmra.mxu0 %v741
        %v1248 = vpop.f32.mrf.mxu0
        %v1249 = vadd.f32 %v1160, %v1248
        %v1250 = vpop.f32.mrf.mxu0
        %v1251 = vadd.f32 %v1162, %v1250
        %1252 = vmatmul.bf16.gmra.mxu0 %v745
        %v1253 = vpop.f32.mrf.mxu0
        %v1254 = vadd.f32 %v1165, %v1253
        %v1255 = vpop.f32.mrf.mxu0
        %v1256 = vadd.f32 %v1167, %v1255
        %1257 = vmatmul.bf16.gmra.mxu0 %v749
        %v1258 = vpop.f32.mrf.mxu0
        %v1259 = vadd.f32 %v1170, %v1258
        %v1260 = vpop.f32.mrf.mxu0
        %v1261 = vadd.f32 %v1172, %v1260
        %1262 = vmatmul.bf16.gmra.mxu0 %v753
        %v1263 = vpop.f32.mrf.mxu0
        %v1264 = vadd.f32 %v1175, %v1263
        %v1265 = vpop.f32.mrf.mxu0
        %v1266 = vadd.f32 %v1177, %v1265
        %1267 = vmatmul.bf16.gmra.mxu0 %v757
        %v1268 = vpop.f32.mrf.mxu0
        %v1269 = vadd.f32 %v1180, %v1268
        %v1270 = vpop.f32.mrf.mxu0
        %v1271 = vadd.f32 %v1182, %v1270
        %1272 = vmatmul.bf16.gmra.mxu0 %v761
        %v1273 = vpop.f32.mrf.mxu0
        %v1274 = vadd.f32 %v1185, %v1273
        %v1275 = vpop.f32.mrf.mxu0
        %v1276 = vadd.f32 %v1187, %v1275
        %1277 = vmatmul.bf16.gmra.mxu0 %v765
        %v1278 = vpop.f32.mrf.mxu0
        %v1279 = vadd.f32 %v1190, %v1278
        %v1280 = vpop.f32.mrf.mxu0
        %v1281 = vadd.f32 %v1192, %v1280
        %1282 = vmatmul.bf16.gmra.mxu0 %v769
        %v1283 = vpop.f32.mrf.mxu0
        %v1284 = vadd.f32 %v1195, %v1283
        %v1285 = vpop.f32.mrf.mxu0
        %v1286 = vadd.f32 %v1197, %v1285
        %1287 = vmatmul.bf16.gmra.mxu0 %v773
        %v1288 = vpop.f32.mrf.mxu0
        %v1289 = vadd.f32 %v1200, %v1288
        %v1290 = vpop.f32.mrf.mxu0
        %v1291 = vadd.f32 %v1202, %v1290
        %1292 = vmatmul.bf16.gmra.mxu0 %v777
        %v1293 = vpop.f32.mrf.mxu0
        %v1294 = vadd.f32 %v1205, %v1293
        %v1295 = vpop.f32.mrf.mxu0
        %v1296 = vadd.f32 %v1207, %v1295
        %1297 = vmatmul.bf16.gmra.mxu0 %v781
        %v1298 = vpop.f32.mrf.mxu0
        %v1299 = vadd.f32 %v1210, %v1298
        %v1300 = vpop.f32.mrf.mxu0
        %v1301 = vadd.f32 %v1212, %v1300
        %1302 = vmatmul.bf16.gmra.mxu0 %v785
        %v1303 = vpop.f32.mrf.mxu0
        %v1304 = vadd.f32 %v1215, %v1303
        %v1305 = vpop.f32.mrf.mxu0
        %v1306 = vadd.f32 %v1217, %v1305
        %1307 = vmatmul.bf16.gmra.mxu0 %v789
        %v1308 = vpop.f32.mrf.mxu0
        %v1309 = vadd.f32 %v1220, %v1308
        %v1310 = vpop.f32.mrf.mxu0
        %v1311 = vadd.f32 %v1222, %v1310
        %1312 = vmatmul.bf16.gmra.mxu0 %v793
        %v1313 = vpop.f32.mrf.mxu0
        %v1314 = vadd.f32 %v1225, %v1313
        %v1315 = vpop.f32.mrf.mxu0
        %v1316 = vadd.f32 %v1227, %v1315
        %1317 = vdwg.mxu0
        %1318 = vmatpush.bf16.msra.mxu0 %v1018
        %1319 = vmatpush.bf16.msra.mxu0 %v1017
        %1320 = vmatpush.bf16.msra.mxu0 %v1016
        %1321 = vmatpush.bf16.msra.mxu0 %v1015
        %1322 = vmatpush.bf16.msra.mxu0 %v1014
        %1323 = vmatpush.bf16.msra.mxu0 %v1013
        %1324 = vmatpush.bf16.msra.mxu0 %v1012
        %1325 = vmatpush.bf16.msra.mxu0 %v1011
        %1326 = vmatmul.bf16.gmra.mxu0 %v734
        %v1327 = vpop.f32.mrf.mxu0
        %v1328 = vadd.f32 %v1239, %v1327
        %v1329 = vpop.f32.mrf.mxu0
        %v1330 = vadd.f32 %v1241, %v1329
        %1331 = vmatmul.bf16.gmra.mxu0 %v738
        %v1332 = vpop.f32.mrf.mxu0
        %v1333 = vadd.f32 %v1244, %v1332
        %v1334 = vpop.f32.mrf.mxu0
        %v1335 = vadd.f32 %v1246, %v1334
        %1336 = vmatmul.bf16.gmra.mxu0 %v742
        %v1337 = vpop.f32.mrf.mxu0
        %v1338 = vadd.f32 %v1249, %v1337
        %v1339 = vpop.f32.mrf.mxu0
        %v1340 = vadd.f32 %v1251, %v1339
        %1341 = vmatmul.bf16.gmra.mxu0 %v746
        %v1342 = vpop.f32.mrf.mxu0
        %v1343 = vadd.f32 %v1254, %v1342
        %v1344 = vpop.f32.mrf.mxu0
        %v1345 = vadd.f32 %v1256, %v1344
        %1346 = vmatmul.bf16.gmra.mxu0 %v750
        %v1347 = vpop.f32.mrf.mxu0
        %v1348 = vadd.f32 %v1259, %v1347
        %v1349 = vpop.f32.mrf.mxu0
        %v1350 = vadd.f32 %v1261, %v1349
        %1351 = vmatmul.bf16.gmra.mxu0 %v754
        %v1352 = vpop.f32.mrf.mxu0
        %v1353 = vadd.f32 %v1264, %v1352
        %v1354 = vpop.f32.mrf.mxu0
        %v1355 = vadd.f32 %v1266, %v1354
        %1356 = vmatmul.bf16.gmra.mxu0 %v758
        %v1357 = vpop.f32.mrf.mxu0
        %v1358 = vadd.f32 %v1269, %v1357
        %v1359 = vpop.f32.mrf.mxu0
        %v1360 = vadd.f32 %v1271, %v1359
        %1361 = vmatmul.bf16.gmra.mxu0 %v762
        %v1362 = vpop.f32.mrf.mxu0
        %v1363 = vadd.f32 %v1274, %v1362
        %v1364 = vpop.f32.mrf.mxu0
        %v1365 = vadd.f32 %v1276, %v1364
        %1366 = vmatmul.bf16.gmra.mxu0 %v766
        %v1367 = vpop.f32.mrf.mxu0
        %v1368 = vadd.f32 %v1279, %v1367
        %v1369 = vpop.f32.mrf.mxu0
        %v1370 = vadd.f32 %v1281, %v1369
        %1371 = vmatmul.bf16.gmra.mxu0 %v770
        %v1372 = vpop.f32.mrf.mxu0
        %v1373 = vadd.f32 %v1284, %v1372
        %v1374 = vpop.f32.mrf.mxu0
        %v1375 = vadd.f32 %v1286, %v1374
        %1376 = vmatmul.bf16.gmra.mxu0 %v774
        %v1377 = vpop.f32.mrf.mxu0
        %v1378 = vadd.f32 %v1289, %v1377
        %v1379 = vpop.f32.mrf.mxu0
        %v1380 = vadd.f32 %v1291, %v1379
        %1381 = vmatmul.bf16.gmra.mxu0 %v778
        %v1382 = vpop.f32.mrf.mxu0
        %v1383 = vadd.f32 %v1294, %v1382
        %v1384 = vpop.f32.mrf.mxu0
        %v1385 = vadd.f32 %v1296, %v1384
        %1386 = vmatmul.bf16.gmra.mxu0 %v782
        %v1387 = vpop.f32.mrf.mxu0
        %v1388 = vadd.f32 %v1299, %v1387
        %v1389 = vpop.f32.mrf.mxu0
        %v1390 = vadd.f32 %v1301, %v1389
        %1391 = vmatmul.bf16.gmra.mxu0 %v786
        %v1392 = vpop.f32.mrf.mxu0
        %v1393 = vadd.f32 %v1304, %v1392
        %v1394 = vpop.f32.mrf.mxu0
        %v1395 = vadd.f32 %v1306, %v1394
        %1396 = vmatmul.bf16.gmra.mxu0 %v790
        %v1397 = vpop.f32.mrf.mxu0
        %v1398 = vadd.f32 %v1309, %v1397
        %v1399 = vpop.f32.mrf.mxu0
        %v1400 = vadd.f32 %v1311, %v1399
        %1401 = vmatmul.bf16.gmra.mxu0 %v794
        %v1402 = vpop.f32.mrf.mxu0
        %v1403 = vadd.f32 %v1314, %v1402
        %v1404 = vpop.f32.mrf.mxu0
        %v1405 = vadd.f32 %v1316, %v1404
        %1406 = vdwg.mxu0
        %v1407 = vadd.f32 %v379, %v1328
        %v1408 = vadd.f32 %v380, %v1330
        %v1409 = vadd.f32 %v381, %v1333
        %v1410 = vadd.f32 %v382, %v1335
        %v1411 = vadd.f32 %v383, %v1338
        %v1412 = vadd.f32 %v384, %v1340
        %v1413 = vadd.f32 %v385, %v1343
        %v1414 = vadd.f32 %v386, %v1345
        %v1415 = vadd.f32 %v387, %v1348
        %v1416 = vadd.f32 %v388, %v1350
        %v1417 = vadd.f32 %v389, %v1353
        %v1418 = vadd.f32 %v390, %v1355
        %v1419 = vadd.f32 %v391, %v1358
        %v1420 = vadd.f32 %v392, %v1360
        %v1421 = vadd.f32 %v393, %v1363
        %v1422 = vadd.f32 %v394, %v1365
        %v1423 = vadd.f32 %v395, %v1368
        %v1424 = vadd.f32 %v396, %v1370
        %v1425 = vadd.f32 %v397, %v1373
        %v1426 = vadd.f32 %v398, %v1375
        %v1427 = vadd.f32 %v399, %v1378
        %v1428 = vadd.f32 %v400, %v1380
        %v1429 = vadd.f32 %v401, %v1383
        %v1430 = vadd.f32 %v402, %v1385
        %v1431 = vadd.f32 %v403, %v1388
        %v1432 = vadd.f32 %v404, %v1390
        %v1433 = vadd.f32 %v405, %v1393
        %v1434 = vadd.f32 %v406, %v1395
        %v1435 = vadd.f32 %v407, %v1398
        %v1436 = vadd.f32 %v408, %v1400
        %v1437 = vadd.f32 %v409, %v1403
        %v1438 = vadd.f32 %v410, %v1405
        %1439 = vst [vmem:[#allocation2] sm:$0xff] %v1407
        %1440 = vst [vmem:[#allocation2 + $0x8] sm:$0xff] %v1408
        %1441 = vst [vmem:[#allocation2 + $0x10] sm:$0xff] %v1409
        %1442 = vst [vmem:[#allocation2 + $0x18] sm:$0xff] %v1410
        %1443 = vst [vmem:[#allocation2 + $0x20] sm:$0xff] %v1411
        %1444 = vst [vmem:[#allocation2 + $0x28] sm:$0xff] %v1412
        %1445 = vst [vmem:[#allocation2 + $0x30] sm:$0xff] %v1413
        %1446 = vst [vmem:[#allocation2 + $0x38] sm:$0xff] %v1414
        %1447 = vst [vmem:[#allocation2 + $0x40] sm:$0xff] %v1415
        %1448 = vst [vmem:[#allocation2 + $0x48] sm:$0xff] %v1416
        %1449 = vst [vmem:[#allocation2 + $0x50] sm:$0xff] %v1417
        %1450 = vst [vmem:[#allocation2 + $0x58] sm:$0xff] %v1418
        %1451 = vst [vmem:[#allocation2 + $0x60] sm:$0xff] %v1419
        %1452 = vst [vmem:[#allocation2 + $0x68] sm:$0xff] %v1420
        %1453 = vst [vmem:[#allocation2 + $0x70] sm:$0xff] %v1421
        %1454 = vst [vmem:[#allocation2 + $0x78] sm:$0xff] %v1422
        %1455 = vst [vmem:[#allocation2 + $0x80] sm:$0xff] %v1423
        %1456 = vst [vmem:[#allocation2 + $0x88] sm:$0xff] %v1424
        %1457 = vst [vmem:[#allocation2 + $0x90] sm:$0xff] %v1425
        %1458 = vst [vmem:[#allocation2 + $0x98] sm:$0xff] %v1426
        %1459 = vst [vmem:[#allocation2 + $0xa0] sm:$0xff] %v1427
        %1460 = vst [vmem:[#allocation2 + $0xa8] sm:$0xff] %v1428
        %1461 = vst [vmem:[#allocation2 + $0xb0] sm:$0xff] %v1429
        %1462 = vst [vmem:[#allocation2 + $0xb8] sm:$0xff] %v1430
        %1463 = vst [vmem:[#allocation2 + $0xc0] sm:$0xff] %v1431
        %1464 = vst [vmem:[#allocation2 + $0xc8] sm:$0xff] %v1432
        %1465 = vst [vmem:[#allocation2 + $0xd0] sm:$0xff] %v1433
        %1466 = vst [vmem:[#allocation2 + $0xd8] sm:$0xff] %v1434
        %1467 = vst [vmem:[#allocation2 + $0xe0] sm:$0xff] %v1435
        %1468 = vst [vmem:[#allocation2 + $0xe8] sm:$0xff] %v1436
        %1469 = vst [vmem:[#allocation2 + $0xf0] sm:$0xff] %v1437
        %1470 = vst [vmem:[#allocation2 + $0xf8] sm:$0xff] %v1438
        %p1471 = scmp.eq.s32.totalorder %s29, 3
        %p1472 = pnand %p1471, %p310
        %p1473 = pneg %p1472
        // Predicated region
        $region49: #{tpu_custom_call.1} parent=31 // pred_check
          _
        $region50: #{tpu_custom_call.1} parent=31 // pred_check_branch
          %1475 = sbr.rel (%p1472) target = $region52
        $region51: #{tpu_custom_call.1} parent=31 // pred_region
          %v1476 = vld [vmem:[#allocation2] sm:$0xff]
          %v1477 = vld [vmem:[#allocation2 + $0x8] sm:$0xff]
          %v1478 = vld [vmem:[#allocation2 + $0x10] sm:$0xff]
          %v1479 = vld [vmem:[#allocation2 + $0x18] sm:$0xff]
          %v1480 = vld [vmem:[#allocation2 + $0x20] sm:$0xff]
          %v1481 = vld [vmem:[#allocation2 + $0x28] sm:$0xff]
          %v1482 = vld [vmem:[#allocation2 + $0x30] sm:$0xff]
          %v1483 = vld [vmem:[#allocation2 + $0x38] sm:$0xff]
          %v1484 = vld [vmem:[#allocation2 + $0x40] sm:$0xff]
          %v1485 = vld [vmem:[#allocation2 + $0x48] sm:$0xff]
          %v1486 = vld [vmem:[#allocation2 + $0x50] sm:$0xff]
          %v1487 = vld [vmem:[#allocation2 + $0x58] sm:$0xff]
          %v1488 = vld [vmem:[#allocation2 + $0x60] sm:$0xff]
          %v1489 = vld [vmem:[#allocation2 + $0x68] sm:$0xff]
          %v1490 = vld [vmem:[#allocation2 + $0x70] sm:$0xff]
          %v1491 = vld [vmem:[#allocation2 + $0x78] sm:$0xff]
          %v1492 = vld [vmem:[#allocation2 + $0x80] sm:$0xff]
          %v1493 = vld [vmem:[#allocation2 + $0x88] sm:$0xff]
          %v1494 = vld [vmem:[#allocation2 + $0x90] sm:$0xff]
          %v1495 = vld [vmem:[#allocation2 + $0x98] sm:$0xff]
          %v1496 = vld [vmem:[#allocation2 + $0xa0] sm:$0xff]
          %v1497 = vld [vmem:[#allocation2 + $0xa8] sm:$0xff]
          %v1498 = vld [vmem:[#allocation2 + $0xb0] sm:$0xff]
          %v1499 = vld [vmem:[#allocation2 + $0xb8] sm:$0xff]
          %v1500 = vld [vmem:[#allocation2 + $0xc0] sm:$0xff]
          %v1501 = vld [vmem:[#allocation2 + $0xc8] sm:$0xff]
          %v1502 = vld [vmem:[#allocation2 + $0xd0] sm:$0xff]
          %v1503 = vld [vmem:[#allocation2 + $0xd8] sm:$0xff]
          %v1504 = vld [vmem:[#allocation2 + $0xe0] sm:$0xff]
          %v1505 = vld [vmem:[#allocation2 + $0xe8] sm:$0xff]
          %v1506 = vld [vmem:[#allocation2 + $0xf0] sm:$0xff]
          %v1507 = vld [vmem:[#allocation2 + $0xf8] sm:$0xff]
          %1508 = vst [vmem:[%s303] sm:$0xff] %v1476
          %1509 = vst [vmem:[%s303 + $0x8] sm:$0xff] %v1477
          %1510 = vst [vmem:[%s303 + $0x10] sm:$0xff] %v1478
          %1511 = vst [vmem:[%s303 + $0x18] sm:$0xff] %v1479
          %1512 = vst [vmem:[%s303 + $0x20] sm:$0xff] %v1480
          %1513 = vst [vmem:[%s303 + $0x28] sm:$0xff] %v1481
          %1514 = vst [vmem:[%s303 + $0x30] sm:$0xff] %v1482
          %1515 = vst [vmem:[%s303 + $0x38] sm:$0xff] %v1483
          %1516 = vst [vmem:[%s303 + $0x40] sm:$0xff] %v1484
          %1517 = vst [vmem:[%s303 + $0x48] sm:$0xff] %v1485
          %1518 = vst [vmem:[%s303 + $0x50] sm:$0xff] %v1486
          %1519 = vst [vmem:[%s303 + $0x58] sm:$0xff] %v1487
          %1520 = vst [vmem:[%s303 + $0x60] sm:$0xff] %v1488
          %1521 = vst [vmem:[%s303 + $0x68] sm:$0xff] %v1489
          %1522 = vst [vmem:[%s303 + $0x70] sm:$0xff] %v1490
          %1523 = vst [vmem:[%s303 + $0x78] sm:$0xff] %v1491
          %1524 = vst [vmem:[%s303 + $0x80] sm:$0xff] %v1492
          %1525 = vst [vmem:[%s303 + $0x88] sm:$0xff] %v1493
          %1526 = vst [vmem:[%s303 + $0x90] sm:$0xff] %v1494
          %1527 = vst [vmem:[%s303 + $0x98] sm:$0xff] %v1495
          %1528 = vst [vmem:[%s303 + $0xa0] sm:$0xff] %v1496
          %1529 = vst [vmem:[%s303 + $0xa8] sm:$0xff] %v1497
          %1530 = vst [vmem:[%s303 + $0xb0] sm:$0xff] %v1498
          %1531 = vst [vmem:[%s303 + $0xb8] sm:$0xff] %v1499
          %1532 = vst [vmem:[%s303 + $0xc0] sm:$0xff] %v1500
          %1533 = vst [vmem:[%s303 + $0xc8] sm:$0xff] %v1501
          %1534 = vst [vmem:[%s303 + $0xd0] sm:$0xff] %v1502
          %1535 = vst [vmem:[%s303 + $0xd8] sm:$0xff] %v1503
          %1536 = vst [vmem:[%s303 + $0xe0] sm:$0xff] %v1504
          %1537 = vst [vmem:[%s303 + $0xe8] sm:$0xff] %v1505
          %1538 = vst [vmem:[%s303 + $0xf0] sm:$0xff] %v1506
          %1539 = vst [vmem:[%s303 + $0xf8] sm:$0xff] %v1507
        $region52: #{tpu_custom_call.1} parent=31 // pred_fallthru
          _
        %s1540 = sand.u32 %s134, 1
        %s1541 = scalar_lea.sflag [#allocation5], %s1540
        %s1542 = sand.u32 %s134, 1
        %s1543 = smul.addr %s1542, 256
        %s1544 = scalar_lea.vmem [#allocation9], %s1543
        // Predicated region
        $region53: #{tpu_custom_call.1} parent=31 // pred_check
          %p1545 = pneg %p144
        $region54: #{tpu_custom_call.1} parent=31 // pred_check_branch
          %1547 = sbr.rel (%p1545) target = $region56
        $region55: #{tpu_custom_call.1} parent=31 // pred_region
          %s1548 = smul.u32 32, %s28
          %1550 = vsyncadd %s1541, 0
          %s1551 = smul.addr %s1548, 8
          %s1552 = scalar_lea.hbm %s3, %s1551
          %s1553 = sshll.u32 %s1544, 4
          %s1554 = int_to_ptr.vmem [resolvable:$true] %s1553
          %s1555 = sshll.u32 %s1552, 4
          %s1556 = int_to_ptr.hbm [resolvable:$true] %s1555
          %1561 = dma.vmem_to_hbm [thread:$0]  %s1554, 4096, %s1556, %s1541, 128, 128, 8
        $region56: #{tpu_custom_call.1} parent=31 // pred_fallthru
          _
      $region32: #{tpu_custom_call.1} parent=5 // pred_fallthru
        _
      %p1562 = scmp.le.s32.totalorder 2, %s18
      // Predicated region
      $region57: #{tpu_custom_call.1} parent=5 // pred_check
        %p1563 = pneg %p1562
      $region58: #{tpu_custom_call.1} parent=5 // pred_check_branch
        %1565 = sbr.rel (%p1563) target = $region60
      $region59: #{tpu_custom_call.1} parent=5 // pred_region
        %s1566 = ssub.s32 %s18, 2
        // Predicated region
        $region61: #{tpu_custom_call.1} parent=59 // pred_check
          %p1567 = pneg %p150
        $region62: #{tpu_custom_call.1} parent=59 // pred_check_branch
          %1569 = sbr.rel (%p1567) target = $region64
        $region63: #{tpu_custom_call.1} parent=59 // pred_region
          %s1570 = sand.u32 %s135, 1
          %s1571 = scalar_lea.sflag [#allocation5], %s1570
          %s1572 = sand.u32 %s135, 1
          %s1573 = smul.addr %s1572, 256
          %s1574 = scalar_lea.vmem [#allocation9], %s1573
          %1576 = dma.done %s1571, 4096
        $region64: #{tpu_custom_call.1} parent=59 // pred_fallthru
          _
      $region60: #{tpu_custom_call.1} parent=5 // pred_fallthru
        _
    $region6: #{tpu_custom_call.1} parent=1 // loop_footer
      %s22 = sadd.s32 1, %s18
    $region7: #{tpu_custom_call.1} parent=1 // loop_footer_branch
      %17 = sbr.rel target = $region3
    $region8: #{tpu_custom_call.1} parent=1 // loop_exit
      _
    %1577 = vsyncpa [#allocation4], 1
    %s1578 = scalar_lea.sflag [#allocation4], 1
    %1579 = vsyncpa %s1578, 1
    %1580 = vsyncpa [#allocation7], 1
    %s1581 = scalar_lea.sflag [#allocation7], 1
    %1582 = vsyncpa %s1581, 1
    %1583 = vsyncpa [#allocation5], 1
    %s1584 = scalar_lea.sflag [#allocation5], 1
    %1585 = vsyncpa %s1584, 1

</llo_original>
